<compile_context>
chip_gen: v6e
topology: v6e:2x2x1
jax: 0.10.0
libtpu: 0.0.40
codegen_flags: <defaults>
</compile_context>

<pallas_src>
import functools
import math
import warnings

import jax
import jax.numpy as jnp
from jax import lax
from jax.experimental import pallas as pl
from jax.experimental.pallas import tpu as pltpu

F32 = jnp.float32
BF16 = jnp.bfloat16
_LN_EPS = 1e-6


def _layernorm(v):
    # E[x^2] - mu^2 form: the two lane reductions are independent (overlap on
    # the XLU) and one full-tile subtract+square pass is saved.
    mu = jnp.mean(v, axis=-1, keepdims=True)
    ms = jnp.mean(v * v, axis=-1, keepdims=True)
    var = ms - mu * mu
    return (v - mu) * lax.rsqrt(var + _LN_EPS)


# ---------------------------------------------------------------------------
# Kernel 1: LN1 + adaLN(MSA) modulate + fused QKV projection (token-tiled).
# ---------------------------------------------------------------------------
def qkv_kernel(x_ref, ada_ref, wqkv_ref, bqkv_ref, q_ref, k_ref, v_ref,
               *, num_heads: int, hd_pad: int):
    x = x_ref[0].astype(F32)                         # (tN, D)
    ada = ada_ref[0].astype(F32)                     # (6, D)
    shift_msa, scale_msa = ada[0], ada[1]

    h = _layernorm(x) * (1.0 + scale_msa) + shift_msa
    qkv = jnp.dot(h.astype(BF16), wqkv_ref[...],
                  preferred_element_type=F32) + bqkv_ref[...]
    qkv = qkv.astype(BF16)                           # cast once; MXU-only consumer

    dp = num_heads * hd_pad
    for hh in range(num_heads):                      # static, 128-lane aligned slices
        lo = hh * hd_pad
        q_ref[0, hh] = qkv[:, lo:lo + hd_pad]
        k_ref[0, hh] = qkv[:, dp + lo:dp + lo + hd_pad]
        v_ref[0, hh] = qkv[:, 2 * dp + lo:2 * dp + lo + hd_pad]


# ---------------------------------------------------------------------------
# Kernel 2: flash attention (online softmax over KV tiles) + per-head output
# projection accumulation + gated residual + LN2/modulate + MLP + residual.
# ---------------------------------------------------------------------------
def attn_mlp_kernel(x_ref, ada_ref, q_ref, k_ref, v_ref,
                    wo_ref, bo_ref, wfc1_ref, bfc1_ref, wfc2_ref, bfc2_ref,
                    o_ref, m_ref, l_ref, acc_ref,
                    *, num_heads: int):
    kj = pl.program_id(2)

    @pl.when(kj == 0)
    def _():
        m_ref[...] = jnp.full(m_ref.shape, -jnp.inf, dtype=F32)
        l_ref[...] = jnp.zeros(l_ref.shape, dtype=F32)
        acc_ref[...] = jnp.zeros(acc_ref.shape, dtype=F32)

    q = q_ref[0]                                     # (H, tQ, hd_pad) bf16
    k = k_ref[0]                                     # (H, tKV, hd_pad) bf16
    v = v_ref[0]                                     # (H, tKV, hd_pad) bf16

    # 1/sqrt(head_dim) is folded into the Q weights; no extra scaling here.
    s = jnp.einsum("hqd,hkd->hqk", q, k, preferred_element_type=F32)
    m_prev = m_ref[...]
    m_new = jnp.maximum(m_prev, s.max(axis=-1, keepdims=True))
    alpha = jnp.exp(m_prev - m_new)
    p = jnp.exp(s - m_new)                           # EUP
    l_ref[...] = alpha * l_ref[...] + p.sum(axis=-1, keepdims=True)
    acc_ref[...] = alpha * acc_ref[...] + jnp.einsum(
        "hqk,hkd->hqd", p.astype(BF16), v, preferred_element_type=F32)
    m_ref[...] = m_new

    @pl.when(kj == pl.num_programs(2) - 1)
    def _():
        tq, d = o_ref.shape[1], o_ref.shape[2]
        x = x_ref[0].astype(F32)                     # (tQ, D)
        ada = ada_ref[0].astype(F32)                 # (6, D)
        gate_msa = ada[2]
        shift_mlp, scale_mlp, gate_mlp = ada[3], ada[4], ada[5]

        # Per-head output-projection accumulation (no concat of head outputs).
        def head_body(hh, attn_acc):
            inv_l = pl.reciprocal(l_ref[hh], approx=True)       # (tQ, 1), EUP
            ctx_h = (acc_ref[hh] * inv_l).astype(BF16)           # (tQ, hd_pad)
            return attn_acc + jnp.dot(ctx_h, wo_ref[hh],
                                      preferred_element_type=F32)

        attn = lax.fori_loop(0, num_heads, head_body,
                             jnp.zeros((tq, d), F32)) + bo_ref[...]
        x1 = x + gate_msa * attn

        # MLP branch: LN2 + modulate -> fc1 -> tanh GELU -> fc2, gated residual.
        h2 = _layernorm(x1) * (1.0 + scale_mlp) + shift_mlp
        u = jnp.dot(h2.astype(BF16), wfc1_ref[...],
                    preferred_element_type=F32) + bfc1_ref[...]
        u = jax.nn.gelu(u, approximate=True)
        y = jnp.dot(u.astype(BF16), wfc2_ref[...],
                    preferred_element_type=F32) + bfc2_ref[...]
        o_ref[0] = (x1 + gate_mlp * y).astype(o_ref.dtype)


# ---------------------------------------------------------------------------
# Host-side helpers
# ---------------------------------------------------------------------------
def _vmem_limit_bytes():
    # Budget ~85% of physical VMEM (128 MiB v5e/v6e, 64 MiB v7x).
    try:
        return int(pltpu.get_tpu_info().vmem_capacity_bytes * 0.85)
    except Exception:
        return 64 * 1024 * 1024


def _pick_tile(n):
    for t in (256, 128, 64, 32, 16, 8):
        if n % t == 0:
            return t
    return n


def _pad_heads_cols(w, b, num_heads, hd, hd_pad):
    # (D, H*hd)/(1, H*hd) -> (D, H*hd_pad)/(1, H*hd_pad), zero-padded lanes.
    d = w.shape[0]
    wp = jnp.pad(w.reshape(d, num_heads, hd), ((0, 0), (0, 0), (0, hd_pad - hd)))
    bp = jnp.pad(b.reshape(1, num_heads, hd), ((0, 0), (0, 0), (0, hd_pad - hd)))
    return wp.reshape(d, num_heads * hd_pad), bp.reshape(1, num_heads * hd_pad)


def _prepare_params(params, num_heads):
    d = params["wq"].shape[0]
    hd = d // num_heads
    hd_pad = ((hd + 127) // 128) * 128               # pad heads to 128 lanes
    scale = 1.0 / math.sqrt(hd)                      # folded into Q weights/bias

    wq, bq = _pad_heads_cols(params["wq"] * scale, params["bq"] * scale,
                             num_heads, hd, hd_pad)
    wk, bk = _pad_heads_cols(params["wk"], params["bk"], num_heads, hd, hd_pad)
    wv, bv = _pad_heads_cols(params["wv"], params["bv"], num_heads, hd, hd_pad)
    wqkv = jnp.concatenate([wq, wk, wv], axis=1).astype(BF16)   # (D, 3*H*hd_pad)
    bqkv = jnp.concatenate([bq, bk, bv], axis=1).astype(F32)    # (1, 3*H*hd_pad)

    # wo rows are grouped per head; pad each head's rows to hd_pad with zeros.
    wo = jnp.pad(params["wo"].reshape(num_heads, hd, d),
                 ((0, 0), (0, hd_pad - hd), (0, 0))).astype(BF16)  # (H, hd_pad, D)

    return dict(
        hd_pad=hd_pad,
        wqkv=wqkv, bqkv=bqkv,
        wo=wo, bo=params["bo"].astype(F32),
        wfc1=params["wfc1"].astype(BF16), bfc1=params["bfc1"].astype(F32),
        wfc2=params["wfc2"].astype(BF16), bfc2=params["bfc2"].astype(F32),
    )


def _build_calls(B, N, D, Dm, num_heads, hd_pad, out_dtype, single_buffer):
    tN = _pick_tile(N)        # token tile (kernel 1)
    tQ = _pick_tile(N)        # query tile (kernel 2)
    tKV = _pick_tile(N)       # kv tile (kernel 2)
    dp = num_heads * hd_pad
    io_bytes = jnp.dtype(out_dtype).itemsize
    vmem_limit = _vmem_limit_bytes()

    def wspec(shape):
        # Weights/biases have constant index maps; single-buffer when possible.
        idx = lambda *_: (0,) * len(shape)
        if single_buffer:
            return pl.BlockSpec(shape, idx, pipeline_mode=pl.Buffered(1))
        return pl.BlockSpec(shape, idx)

    qkv_cost = pl.CostEstimate(
        flops=int(2 * B * N * D * 3 * dp),
        transcendentals=0,
        bytes_accessed=int(B * N * D * io_bytes + B * 6 * D * 4
                           + D * 3 * dp * 2 + 3 * dp * 4
                           + 3 * B * num_heads * N * hd_pad * 2),
    )
    qkv_call = pl.pallas_call(
        functools.partial(qkv_kernel, num_heads=num_heads, hd_pad=hd_pad),
        out_shape=(jax.ShapeDtypeStruct((B, num_heads, N, hd_pad), BF16),
                   jax.ShapeDtypeStruct((B, num_heads, N, hd_pad), BF16),
                   jax.ShapeDtypeStruct((B, num_heads, N, hd_pad), BF16)),
        grid_spec=pltpu.PrefetchScalarGridSpec(
            num_scalar_prefetch=0,
            grid=(B, N // tN),
            in_specs=[
                pl.BlockSpec((1, tN, D), lambda b, i: (b, i, 0)),      # x
                pl.BlockSpec((1, 6, D), lambda b, i: (b, 0, 0)),       # ada
                wspec((D, 3 * dp)),                                    # wqkv (bf16)
                wspec((1, 3 * dp)),                                    # bqkv (f32)
            ],
            out_specs=[
                pl.BlockSpec((1, num_heads, tN, hd_pad), lambda b, i: (b, 0, i, 0)),
                pl.BlockSpec((1, num_heads, tN, hd_pad), lambda b, i: (b, 0, i, 0)),
                pl.BlockSpec((1, num_heads, tN, hd_pad), lambda b, i: (b, 0, i, 0)),
            ],
        ),
        compiler_params=pltpu.CompilerParams(
            dimension_semantics=("parallel", "parallel"),
            vmem_limit_bytes=vmem_limit),
        cost_estimate=qkv_cost,
    )

    attn_cost = pl.CostEstimate(
        flops=int(B * (4 * num_heads * N * N * hd_pad + 2 * N * dp * D
                       + 4 * N * D * Dm)),
        transcendentals=int(B * (num_heads * N * N + N * Dm)),
        bytes_accessed=int(2 * B * N * D * io_bytes + B * 6 * D * 4
                           + 3 * B * num_heads * N * hd_pad * 2 * (N // tQ)
                           + (num_heads * hd_pad * D + 2 * D * Dm) * 2
                           + (2 * D + Dm) * 4),
    )
    attn_call = pl.pallas_call(
        functools.partial(attn_mlp_kernel, num_heads=num_heads),
        out_shape=jax.ShapeDtypeStruct((B, N, D), out_dtype),
        grid_spec=pltpu.PrefetchScalarGridSpec(
            num_scalar_prefetch=0,
            grid=(B, N // tQ, N // tKV),
            in_specs=[
                pl.BlockSpec((1, tQ, D), lambda b, qi, kj: (b, qi, 0)),        # x
                pl.BlockSpec((1, 6, D), lambda b, qi, kj: (b, 0, 0)),          # ada
                pl.BlockSpec((1, num_heads, tQ, hd_pad),
                             lambda b, qi, kj: (b, 0, qi, 0)),                 # q
                pl.BlockSpec((1, num_heads, tKV, hd_pad),
                             lambda b, qi, kj: (b, 0, kj, 0)),                 # k
                pl.BlockSpec((1, num_heads, tKV, hd_pad),
                             lambda b, qi, kj: (b, 0, kj, 0)),                 # v
                wspec((num_heads, hd_pad, D)),                                 # wo
                wspec((1, D)),                                                 # bo
                wspec((D, Dm)),                                                # wfc1
                wspec((1, Dm)),                                                # bfc1
                wspec((Dm, D)),                                                # wfc2
                wspec((1, D)),                                                 # bfc2
            ],
            out_specs=pl.BlockSpec((1, tQ, D), lambda b, qi, kj: (b, qi, 0)),
            scratch_shapes=[
                pltpu.VMEM((num_heads, tQ, 1), F32),        # running max
                pltpu.VMEM((num_heads, tQ, 1), F32),        # running denominator
                pltpu.VMEM((num_heads, tQ, hd_pad), F32),   # context accumulator
            ],
        ),
        compiler_params=pltpu.CompilerParams(
            dimension_semantics=("parallel", "parallel", "arbitrary"),
            vmem_limit_bytes=vmem_limit),
        cost_estimate=attn_cost,
    )
    return qkv_call, attn_call


_WEIGHT_BUFFERING = None   # True: pl.Buffered(1) accepted; False: default buffering.


def sit_block_forward(x, c, params, num_heads):
    global _WEIGHT_BUFFERING
    B, N, D = x.shape
    assert D % num_heads == 0
    Dm = params["wfc1"].shape[1]
    prep = _prepare_params(params, num_heads)
    hd_pad = prep["hd_pad"]

    # adaLN-Zero: tiny batched matmul done in XLA (out of kernel VMEM).
    ada = (jax.nn.silu(c.astype(F32)) @ params["wada"].astype(F32)
           + params["bada"].astype(F32)[0]).reshape(B, 6, D)

    modes = [True, False] if _WEIGHT_BUFFERING is None else [_WEIGHT_BUFFERING]
    last_err = None
    for single_buffer in modes:
        try:
            k1, k2 = _build_calls(B, N, D, Dm, num_heads, hd_pad, x.dtype,
                                  single_buffer)
            q, k, v = k1(x, ada, prep["wqkv"], prep["bqkv"])
            out = k2(x, ada, q, k, v,
                     prep["wo"], prep["bo"],
                     prep["wfc1"], prep["bfc1"],
                     prep["wfc2"], prep["bfc2"])
            out = jax.block_until_ready(out)
            if _WEIGHT_BUFFERING is None:
                _WEIGHT_BUFFERING = single_buffer      # record which path compiled
            return out
        except Exception as e:                         # noqa: BLE001
            last_err = e
            if not single_buffer:
                raise
            warnings.warn(
                "sit_block: pl.Buffered(1) weight specs failed "
                f"({type(e).__name__}); retrying with default double-buffered "
                "weights (uses 2x weight VMEM).")
    raise last_err


# ---------------------------------------------------------------------------
# Pure-JAX reference (mirrors the PyTorch module semantics, f32 throughout).
# ---------------------------------------------------------------------------
def sit_block_reference(x, c, p, num_heads):
    B, N, D = x.shape
    hd = D // num_heads
    eps = 1e-6

    def ln(v):
        mu = jnp.mean(v, axis=-1, keepdims=True)
        var = jnp.mean((v - mu) ** 2, axis=-1, keepdims=True)
        return (v - mu) / jnp.sqrt(var + eps)

    ada = jax.nn.silu(c) @ p["wada"] + p["bada"][0]
    sm, scm, gm, smlp, scmlp, gmlp = jnp.split(ada, 6, axis=1)

    def modulate(v, shift, sc):
        return v * (1.0 + sc[:, None, :]) + shift[:, None, :]

    h = modulate(ln(x), sm, scm)
    q = h @ p["wq"] + p["bq"][0]
    k = h @ p["wk"] + p["bk"][0]
    v = h @ p["wv"] + p["bv"][0]
    q = q.reshape(B, N, num_heads, hd).transpose(0, 2, 1, 3)
    k = k.reshape(B, N, num_heads, hd).transpose(0, 2, 1, 3)
    v = v.reshape(B, N, num_heads, hd).transpose(0, 2, 1, 3)
    logits = jnp.einsum("bhqd,bhkd->bhqk", q, k) / math.sqrt(hd)
    probs = jax.nn.softmax(logits, axis=-1)
    attn = jnp.einsum("bhqk,bhkd->bhqd", probs, v)
    attn = attn.transpose(0, 2, 1, 3).reshape(B, N, D)
    attn = attn @ p["wo"] + p["bo"][0]
    x = x + gm[:, None, :] * attn

    h2 = modulate(ln(x), smlp, scmlp)
    u = h2 @ p["wfc1"] + p["bfc1"][0]
    u = jax.nn.gelu(u, approximate=True)
    u = u @ p["wfc2"] + p["bfc2"][0]
    return x + gmlp[:, None, :] * u


# ---------------------------------------------------------------------------
if __name__ == "__main__":
    B, N, D = 2, 8, 32            # batch, tokens, hidden
    num_heads = 4
    Dm = int(D * 4.0)             # mlp_ratio = 4.0

    key = jax.random.PRNGKey(0)
    ks = jax.random.split(key, 20)
    init = lambda k, shape, s=0.02: (s * jax.random.normal(k, shape)).astype(jnp.float32)

    params = {
        "wada": init(ks[0], (D, 6 * D)), "bada": init(ks[1], (1, 6 * D)),
        "wq": init(ks[2], (D, D)), "bq": init(ks[3], (1, D)),
        "wk": init(ks[4], (D, D)), "bk": init(ks[5], (1, D)),
        "wv": init(ks[6], (D, D)), "bv": init(ks[7], (1, D)),
        "wo": init(ks[8], (D, D)), "bo": init(ks[9], (1, D)),
        "wfc1": init(ks[10], (D, Dm)), "bfc1": init(ks[11], (1, Dm)),
        "wfc2": init(ks[12], (Dm, D)), "bfc2": init(ks[13], (1, D)),
    }

    x = jax.random.normal(ks[14], (B, N, D), dtype=jnp.float32)
    c = jax.random.normal(ks[15], (B, D), dtype=jnp.float32)

    out = sit_block_forward(x, c, params, num_heads)
    out = jax.block_until_ready(out)

    ref = jax.block_until_ready(sit_block_reference(x, c, params, num_heads))
    assert out.shape == (B, N, D)
    assert jnp.allclose(out, ref, rtol=1e-2, atol=1e-2), (
        f"max abs diff {jnp.max(jnp.abs(out - ref))}")

    print("KERNEL_OK")
</pallas_src>

<mosaic_0001>
module attributes {stable_mosaic.version = 11 : i64} {
  func.func @qkv_kernel(%arg0: i32, %arg1: i32, %arg2: memref<1x8x32xf32, #tpu.memory_space<vmem>>, %arg3: memref<1x6x32xf32, #tpu.memory_space<vmem>>, %arg4: memref<32x1536xbf16, #tpu.memory_space<vmem>>, %arg5: memref<1x1536xf32, #tpu.memory_space<vmem>>, %arg6: memref<1x4x8x128xbf16, #tpu.memory_space<vmem>>, %arg7: memref<1x4x8x128xbf16, #tpu.memory_space<vmem>>, %arg8: memref<1x4x8x128xbf16, #tpu.memory_space<vmem>>) attributes {dimension_semantics = [#tpu.dimension_semantics<parallel>, #tpu.dimension_semantics<parallel>], iteration_bounds = array<i64: 2, 1>, scalar_prefetch = 0 : i64, scratch_operands = 0 : i64, tpu.core_type = #tpu.core_type<tc>, window_params = [{transform_indices = @transform_0, window_bounds = array<i64: 1, 8, 32>}, {transform_indices = @transform_1, window_bounds = array<i64: 1, 6, 32>}, {pipeline_mode = #tpu.pipeline_mode<synchronous>, transform_indices = @transform_2, window_bounds = array<i64: 32, 1536>}, {pipeline_mode = #tpu.pipeline_mode<synchronous>, transform_indices = @transform_3, window_bounds = array<i64: 1, 1536>}, {transform_indices = @transform_4, window_bounds = array<i64: 1, 4, 8, 128>}, {transform_indices = @transform_5, window_bounds = array<i64: 1, 4, 8, 128>}, {transform_indices = @transform_6, window_bounds = array<i64: 1, 4, 8, 128>}]} {
    %c0 = arith.constant 0 : index
    %c0_0 = arith.constant 0 : index
    %c0_1 = arith.constant 0 : index
    %0 = vector.load %arg2[%c0, %c0_0, %c0_1] : memref<1x8x32xf32, #tpu.memory_space<vmem>>, vector<1x8x32xf32>
    %1 = vector.shape_cast %0 : vector<1x8x32xf32> to vector<8x32xf32>
    %c0_2 = arith.constant 0 : index
    %c0_3 = arith.constant 0 : index
    %c0_4 = arith.constant 0 : index
    %2 = vector.load %arg3[%c0_2, %c0_3, %c0_4] : memref<1x6x32xf32, #tpu.memory_space<vmem>>, vector<1x6x32xf32>
    %3 = vector.shape_cast %2 : vector<1x6x32xf32> to vector<6x32xf32>
    %4 = vector.extract_strided_slice %3 {offsets = [0, 0], sizes = [1, 32], strides = [1, 1]} : vector<6x32xf32> to vector<1x32xf32>
    %5 = vector.shape_cast %4 : vector<1x32xf32> to vector<32xf32>
    %6 = vector.extract_strided_slice %3 {offsets = [1, 0], sizes = [1, 32], strides = [1, 1]} : vector<6x32xf32> to vector<1x32xf32>
    %7 = vector.shape_cast %6 : vector<1x32xf32> to vector<32xf32>
    %cst = arith.constant dense<0.000000e+00> : vector<8xf32>
    %8 = vector.multi_reduction <add>, %1, %cst [1] : vector<8x32xf32> to vector<8xf32>
    %9 = vector.shape_cast %8 : vector<8xf32> to vector<8x1xf32>
    %cst_5 = arith.constant 3.200000e+01 : f32
    %10 = vector.broadcast %cst_5 : f32 to vector<8x1xf32>
    %11 = arith.divf %9, %10 : vector<8x1xf32>
    %12 = arith.mulf %1, %1 : vector<8x32xf32>
    %cst_6 = arith.constant dense<0.000000e+00> : vector<8xf32>
    %13 = vector.multi_reduction <add>, %12, %cst_6 [1] : vector<8x32xf32> to vector<8xf32>
    %14 = vector.shape_cast %13 : vector<8xf32> to vector<8x1xf32>
    %cst_7 = arith.constant 3.200000e+01 : f32
    %15 = vector.broadcast %cst_7 : f32 to vector<8x1xf32>
    %16 = arith.divf %14, %15 : vector<8x1xf32>
    %17 = arith.mulf %11, %11 : vector<8x1xf32>
    %18 = arith.subf %16, %17 : vector<8x1xf32>
    %19 = vector.broadcast %11 : vector<8x1xf32> to vector<8x32xf32>
    %20 = arith.subf %1, %19 : vector<8x32xf32>
    %cst_8 = arith.constant 9.99999997E-7 : f32
    %21 = vector.broadcast %cst_8 : f32 to vector<8x1xf32>
    %22 = arith.addf %18, %21 : vector<8x1xf32>
    %23 = math.rsqrt %22 : vector<8x1xf32>
    %24 = vector.broadcast %23 : vector<8x1xf32> to vector<8x32xf32>
    %25 = arith.mulf %20, %24 : vector<8x32xf32>
    %cst_9 = arith.constant 1.000000e+00 : f32
    %26 = vector.broadcast %cst_9 : f32 to vector<32xf32>
    %27 = arith.addf %26, %7 : vector<32xf32>
    %28 = vector.shape_cast %27 : vector<32xf32> to vector<1x32xf32>
    %29 = vector.broadcast %28 : vector<1x32xf32> to vector<8x32xf32>
    %30 = arith.mulf %25, %29 : vector<8x32xf32>
    %31 = vector.shape_cast %5 : vector<32xf32> to vector<1x32xf32>
    %32 = vector.broadcast %31 : vector<1x32xf32> to vector<8x32xf32>
    %33 = arith.addf %30, %32 : vector<8x32xf32>
    %34 = arith.truncf %33 : vector<8x32xf32> to vector<8x32xbf16>
    %c0_10 = arith.constant 0 : index
    %c0_11 = arith.constant 0 : index
    %35 = vector.load %arg4[%c0_10, %c0_11] : memref<32x1536xbf16, #tpu.memory_space<vmem>>, vector<32x1536xbf16>
    %cst_12 = arith.constant dense<0.000000e+00> : vector<8x1536xf32>
    %36 = tpu.matmul %34, %35, %cst_12 {dimension_numbers = #tpu.dot_dimension_numbers<[1], [0], [0], [1], [0, 0, 1, 1], [], []>} : vector<8x32xbf16>, vector<32x1536xbf16>, vector<8x1536xf32> -> vector<8x1536xf32>
    %c0_13 = arith.constant 0 : index
    %c0_14 = arith.constant 0 : index
    %37 = vector.load %arg5[%c0_13, %c0_14] : memref<1x1536xf32, #tpu.memory_space<vmem>>, vector<1x1536xf32>
    %38 = vector.broadcast %37 : vector<1x1536xf32> to vector<8x1536xf32>
    %39 = arith.addf %36, %38 : vector<8x1536xf32>
    %40 = arith.truncf %39 : vector<8x1536xf32> to vector<8x1536xbf16>
    %41 = vector.extract_strided_slice %40 {offsets = [0, 0], sizes = [8, 128], strides = [1, 1]} : vector<8x1536xbf16> to vector<8x128xbf16>
    %c0_15 = arith.constant 0 : index
    %c0_16 = arith.constant 0 : index
    %c0_17 = arith.constant 0 : index
    %c0_18 = arith.constant 0 : index
    %42 = vector.load %arg6[%c0_15, %c0_16, %c0_17, %c0_18] : memref<1x4x8x128xbf16, #tpu.memory_space<vmem>>, vector<1x1x8x128xbf16>
    %43 = vector.shape_cast %42 : vector<1x1x8x128xbf16> to vector<8x128xbf16>
    %44 = vector.shape_cast %41 : vector<8x128xbf16> to vector<1x1x8x128xbf16>
    tpu.vector_store %arg6[%c0_15, %c0_16, %c0_17, %c0_18], %44 {strides = array<i32>} : memref<1x4x8x128xbf16, #tpu.memory_space<vmem>>, vector<1x1x8x128xbf16>,
    %45 = vector.extract_strided_slice %40 {offsets = [0, 512], sizes = [8, 128], strides = [1, 1]} : vector<8x1536xbf16> to vector<8x128xbf16>
    %c0_19 = arith.constant 0 : index
    %c0_20 = arith.constant 0 : index
    %c0_21 = arith.constant 0 : index
    %c0_22 = arith.constant 0 : index
    %46 = vector.load %arg7[%c0_19, %c0_20, %c0_21, %c0_22] : memref<1x4x8x128xbf16, #tpu.memory_space<vmem>>, vector<1x1x8x128xbf16>
    %47 = vector.shape_cast %46 : vector<1x1x8x128xbf16> to vector<8x128xbf16>
    %48 = vector.shape_cast %45 : vector<8x128xbf16> to vector<1x1x8x128xbf16>
    tpu.vector_store %arg7[%c0_19, %c0_20, %c0_21, %c0_22], %48 {strides = array<i32>} : memref<1x4x8x128xbf16, #tpu.memory_space<vmem>>, vector<1x1x8x128xbf16>,
    %49 = vector.extract_strided_slice %40 {offsets = [0, 1024], sizes = [8, 128], strides = [1, 1]} : vector<8x1536xbf16> to vector<8x128xbf16>
    %c0_23 = arith.constant 0 : index
    %c0_24 = arith.constant 0 : index
    %c0_25 = arith.constant 0 : index
    %c0_26 = arith.constant 0 : index
    %50 = vector.load %arg8[%c0_23, %c0_24, %c0_25, %c0_26] : memref<1x4x8x128xbf16, #tpu.memory_space<vmem>>, vector<1x1x8x128xbf16>
    %51 = vector.shape_cast %50 : vector<1x1x8x128xbf16> to vector<8x128xbf16>
    %52 = vector.shape_cast %49 : vector<8x128xbf16> to vector<1x1x8x128xbf16>
    tpu.vector_store %arg8[%c0_23, %c0_24, %c0_25, %c0_26], %52 {strides = array<i32>} : memref<1x4x8x128xbf16, #tpu.memory_space<vmem>>, vector<1x1x8x128xbf16>,
    %53 = vector.extract_strided_slice %40 {offsets = [0, 128], sizes = [8, 128], strides = [1, 1]} : vector<8x1536xbf16> to vector<8x128xbf16>
    %c0_27 = arith.constant 0 : index
    %c1 = arith.constant 1 : index
    %c0_28 = arith.constant 0 : index
    %c0_29 = arith.constant 0 : index
    %54 = vector.load %arg6[%c0_27, %c1, %c0_28, %c0_29] : memref<1x4x8x128xbf16, #tpu.memory_space<vmem>>, vector<1x1x8x128xbf16>
    %55 = vector.shape_cast %54 : vector<1x1x8x128xbf16> to vector<8x128xbf16>
    %56 = vector.shape_cast %53 : vector<8x128xbf16> to vector<1x1x8x128xbf16>
    tpu.vector_store %arg6[%c0_27, %c1, %c0_28, %c0_29], %56 {strides = array<i32>} : memref<1x4x8x128xbf16, #tpu.memory_space<vmem>>, vector<1x1x8x128xbf16>,
    %57 = vector.extract_strided_slice %40 {offsets = [0, 640], sizes = [8, 128], strides = [1, 1]} : vector<8x1536xbf16> to vector<8x128xbf16>
    %c0_30 = arith.constant 0 : index
    %c1_31 = arith.constant 1 : index
    %c0_32 = arith.constant 0 : index
    %c0_33 = arith.constant 0 : index
    %58 = vector.load %arg7[%c0_30, %c1_31, %c0_32, %c0_33] : memref<1x4x8x128xbf16, #tpu.memory_space<vmem>>, vector<1x1x8x128xbf16>
    %59 = vector.shape_cast %58 : vector<1x1x8x128xbf16> to vector<8x128xbf16>
    %60 = vector.shape_cast %57 : vector<8x128xbf16> to vector<1x1x8x128xbf16>
    tpu.vector_store %arg7[%c0_30, %c1_31, %c0_32, %c0_33], %60 {strides = array<i32>} : memref<1x4x8x128xbf16, #tpu.memory_space<vmem>>, vector<1x1x8x128xbf16>,
    %61 = vector.extract_strided_slice %40 {offsets = [0, 1152], sizes = [8, 128], strides = [1, 1]} : vector<8x1536xbf16> to vector<8x128xbf16>
    %c0_34 = arith.constant 0 : index
    %c1_35 = arith.constant 1 : index
    %c0_36 = arith.constant 0 : index
    %c0_37 = arith.constant 0 : index
    %62 = vector.load %arg8[%c0_34, %c1_35, %c0_36, %c0_37] : memref<1x4x8x128xbf16, #tpu.memory_space<vmem>>, vector<1x1x8x128xbf16>
    %63 = vector.shape_cast %62 : vector<1x1x8x128xbf16> to vector<8x128xbf16>
    %64 = vector.shape_cast %61 : vector<8x128xbf16> to vector<1x1x8x128xbf16>
    tpu.vector_store %arg8[%c0_34, %c1_35, %c0_36, %c0_37], %64 {strides = array<i32>} : memref<1x4x8x128xbf16, #tpu.memory_space<vmem>>, vector<1x1x8x128xbf16>,
    %65 = vector.extract_strided_slice %40 {offsets = [0, 256], sizes = [8, 128], strides = [1, 1]} : vector<8x1536xbf16> to vector<8x128xbf16>
    %c0_38 = arith.constant 0 : index
    %c2 = arith.constant 2 : index
    %c0_39 = arith.constant 0 : index
    %c0_40 = arith.constant 0 : index
    %66 = vector.load %arg6[%c0_38, %c2, %c0_39, %c0_40] : memref<1x4x8x128xbf16, #tpu.memory_space<vmem>>, vector<1x1x8x128xbf16>
    %67 = vector.shape_cast %66 : vector<1x1x8x128xbf16> to vector<8x128xbf16>
    %68 = vector.shape_cast %65 : vector<8x128xbf16> to vector<1x1x8x128xbf16>
    tpu.vector_store %arg6[%c0_38, %c2, %c0_39, %c0_40], %68 {strides = array<i32>} : memref<1x4x8x128xbf16, #tpu.memory_space<vmem>>, vector<1x1x8x128xbf16>,
    %69 = vector.extract_strided_slice %40 {offsets = [0, 768], sizes = [8, 128], strides = [1, 1]} : vector<8x1536xbf16> to vector<8x128xbf16>
    %c0_41 = arith.constant 0 : index
    %c2_42 = arith.constant 2 : index
    %c0_43 = arith.constant 0 : index
    %c0_44 = arith.constant 0 : index
    %70 = vector.load %arg7[%c0_41, %c2_42, %c0_43, %c0_44] : memref<1x4x8x128xbf16, #tpu.memory_space<vmem>>, vector<1x1x8x128xbf16>
    %71 = vector.shape_cast %70 : vector<1x1x8x128xbf16> to vector<8x128xbf16>
    %72 = vector.shape_cast %69 : vector<8x128xbf16> to vector<1x1x8x128xbf16>
    tpu.vector_store %arg7[%c0_41, %c2_42, %c0_43, %c0_44], %72 {strides = array<i32>} : memref<1x4x8x128xbf16, #tpu.memory_space<vmem>>, vector<1x1x8x128xbf16>,
    %73 = vector.extract_strided_slice %40 {offsets = [0, 1280], sizes = [8, 128], strides = [1, 1]} : vector<8x1536xbf16> to vector<8x128xbf16>
    %c0_45 = arith.constant 0 : index
    %c2_46 = arith.constant 2 : index
    %c0_47 = arith.constant 0 : index
    %c0_48 = arith.constant 0 : index
    %74 = vector.load %arg8[%c0_45, %c2_46, %c0_47, %c0_48] : memref<1x4x8x128xbf16, #tpu.memory_space<vmem>>, vector<1x1x8x128xbf16>
    %75 = vector.shape_cast %74 : vector<1x1x8x128xbf16> to vector<8x128xbf16>
    %76 = vector.shape_cast %73 : vector<8x128xbf16> to vector<1x1x8x128xbf16>
    tpu.vector_store %arg8[%c0_45, %c2_46, %c0_47, %c0_48], %76 {strides = array<i32>} : memref<1x4x8x128xbf16, #tpu.memory_space<vmem>>, vector<1x1x8x128xbf16>,
    %77 = vector.extract_strided_slice %40 {offsets = [0, 384], sizes = [8, 128], strides = [1, 1]} : vector<8x1536xbf16> to vector<8x128xbf16>
    %c0_49 = arith.constant 0 : index
    %c3 = arith.constant 3 : index
    %c0_50 = arith.constant 0 : index
    %c0_51 = arith.constant 0 : index
    %78 = vector.load %arg6[%c0_49, %c3, %c0_50, %c0_51] : memref<1x4x8x128xbf16, #tpu.memory_space<vmem>>, vector<1x1x8x128xbf16>
    %79 = vector.shape_cast %78 : vector<1x1x8x128xbf16> to vector<8x128xbf16>
    %80 = vector.shape_cast %77 : vector<8x128xbf16> to vector<1x1x8x128xbf16>
    tpu.vector_store %arg6[%c0_49, %c3, %c0_50, %c0_51], %80 {strides = array<i32>} : memref<1x4x8x128xbf16, #tpu.memory_space<vmem>>, vector<1x1x8x128xbf16>,
    %81 = vector.extract_strided_slice %40 {offsets = [0, 896], sizes = [8, 128], strides = [1, 1]} : vector<8x1536xbf16> to vector<8x128xbf16>
    %c0_52 = arith.constant 0 : index
    %c3_53 = arith.constant 3 : index
    %c0_54 = arith.constant 0 : index
    %c0_55 = arith.constant 0 : index
    %82 = vector.load %arg7[%c0_52, %c3_53, %c0_54, %c0_55] : memref<1x4x8x128xbf16, #tpu.memory_space<vmem>>, vector<1x1x8x128xbf16>
    %83 = vector.shape_cast %82 : vector<1x1x8x128xbf16> to vector<8x128xbf16>
    %84 = vector.shape_cast %81 : vector<8x128xbf16> to vector<1x1x8x128xbf16>
    tpu.vector_store %arg7[%c0_52, %c3_53, %c0_54, %c0_55], %84 {strides = array<i32>} : memref<1x4x8x128xbf16, #tpu.memory_space<vmem>>, vector<1x1x8x128xbf16>,
    %85 = vector.extract_strided_slice %40 {offsets = [0, 1408], sizes = [8, 128], strides = [1, 1]} : vector<8x1536xbf16> to vector<8x128xbf16>
    %c0_56 = arith.constant 0 : index
    %c3_57 = arith.constant 3 : index
    %c0_58 = arith.constant 0 : index
    %c0_59 = arith.constant 0 : index
    %86 = vector.load %arg8[%c0_56, %c3_57, %c0_58, %c0_59] : memref<1x4x8x128xbf16, #tpu.memory_space<vmem>>, vector<1x1x8x128xbf16>
    %87 = vector.shape_cast %86 : vector<1x1x8x128xbf16> to vector<8x128xbf16>
    %88 = vector.shape_cast %85 : vector<8x128xbf16> to vector<1x1x8x128xbf16>
    tpu.vector_store %arg8[%c0_56, %c3_57, %c0_58, %c0_59], %88 {strides = array<i32>} : memref<1x4x8x128xbf16, #tpu.memory_space<vmem>>, vector<1x1x8x128xbf16>,
    return
  }
  func.func @transform_0(%arg0: i32, %arg1: i32) -> (i32, i32, i32) {
    %c0_i32 = arith.constant 0 : i32
    %c0_i32_0 = arith.constant 0 : i32
    return %arg0, %arg1, %c0_i32 : i32, i32, i32
  }
  func.func @transform_1(%arg0: i32, %arg1: i32) -> (i32, i32, i32) {
    %c0_i32 = arith.constant 0 : i32
    %c0_i32_0 = arith.constant 0 : i32
    %c0_i32_1 = arith.constant 0 : i32
    return %arg0, %c0_i32, %c0_i32_0 : i32, i32, i32
  }
  func.func @transform_2(%arg0: i32, %arg1: i32) -> (i32, i32) {
    %c0_i32 = arith.constant 0 : i32
    %c0_i32_0 = arith.constant 0 : i32
    %c0_i32_1 = arith.constant 0 : i32
    return %c0_i32, %c0_i32_0 : i32, i32
  }
  func.func @transform_3(%arg0: i32, %arg1: i32) -> (i32, i32) {
    %c0_i32 = arith.constant 0 : i32
    %c0_i32_0 = arith.constant 0 : i32
    %c0_i32_1 = arith.constant 0 : i32
    return %c0_i32, %c0_i32_0 : i32, i32
  }
  func.func @transform_4(%arg0: i32, %arg1: i32) -> (i32, i32, i32, i32) {
    %c0_i32 = arith.constant 0 : i32
    %c0_i32_0 = arith.constant 0 : i32
    %c0_i32_1 = arith.constant 0 : i32
    return %arg0, %c0_i32, %arg1, %c0_i32_0 : i32, i32, i32, i32
  }
  func.func @transform_5(%arg0: i32, %arg1: i32) -> (i32, i32, i32, i32) {
    %c0_i32 = arith.constant 0 : i32
    %c0_i32_0 = arith.constant 0 : i32
    %c0_i32_1 = arith.constant 0 : i32
    return %arg0, %c0_i32, %arg1, %c0_i32_0 : i32, i32, i32, i32
  }
  func.func @transform_6(%arg0: i32, %arg1: i32) -> (i32, i32, i32, i32) {
    %c0_i32 = arith.constant 0 : i32
    %c0_i32_0 = arith.constant 0 : i32
    %c0_i32_1 = arith.constant 0 : i32
    return %arg0, %c0_i32, %arg1, %c0_i32_0 : i32, i32, i32, i32
  }
}

module attributes {stable_mosaic.version = 11 : i64} {
  func.func @qkv_kernel(%arg0: i32, %arg1: i32, %arg2: memref<1x8x32xf32, #tpu.memory_space<vmem>>, %arg3: memref<1x6x32xf32, #tpu.memory_space<vmem>>, %arg4: memref<32x1536xbf16, #tpu.memory_space<vmem>>, %arg5: memref<1x1536xf32, #tpu.memory_space<vmem>>, %arg6: memref<1x4x8x128xbf16, #tpu.memory_space<vmem>>, %arg7: memref<1x4x8x128xbf16, #tpu.memory_space<vmem>>, %arg8: memref<1x4x8x128xbf16, #tpu.memory_space<vmem>>) attributes {dimension_semantics = [#tpu.dimension_semantics<parallel>, #tpu.dimension_semantics<parallel>], iteration_bounds = array<i64: 2, 1>, scalar_prefetch = 0 : i64, scratch_operands = 0 : i64, tpu.core_type = #tpu.core_type<tc>, window_params = [{transform_indices = @transform_0, window_bounds = array<i64: 1, 8, 32>}, {transform_indices = @transform_1, window_bounds = array<i64: 1, 6, 32>}, {pipeline_mode = #tpu.pipeline_mode<synchronous>, transform_indices = @transform_2, window_bounds = array<i64: 32, 1536>}, {pipeline_mode = #tpu.pipeline_mode<synchronous>, transform_indices = @transform_3, window_bounds = array<i64: 1, 1536>}, {transform_indices = @transform_4, window_bounds = array<i64: 1, 4, 8, 128>}, {transform_indices = @transform_5, window_bounds = array<i64: 1, 4, 8, 128>}, {transform_indices = @transform_6, window_bounds = array<i64: 1, 4, 8, 128>}]} {
    %c0 = arith.constant 0 : index
    %c0_0 = arith.constant 0 : index
    %c0_1 = arith.constant 0 : index
    %0 = vector.load %arg2[%c0, %c0_0, %c0_1] : memref<1x8x32xf32, #tpu.memory_space<vmem>>, vector<1x8x32xf32>
    %1 = vector.shape_cast %0 : vector<1x8x32xf32> to vector<8x32xf32>
    %c0_2 = arith.constant 0 : index
    %c0_3 = arith.constant 0 : index
    %c0_4 = arith.constant 0 : index
    %2 = vector.load %arg3[%c0_2, %c0_3, %c0_4] : memref<1x6x32xf32, #tpu.memory_space<vmem>>, vector<1x6x32xf32>
    %3 = vector.shape_cast %2 : vector<1x6x32xf32> to vector<6x32xf32>
    %4 = vector.extract_strided_slice %3 {offsets = [0, 0], sizes = [1, 32], strides = [1, 1]} : vector<6x32xf32> to vector<1x32xf32>
    %5 = vector.shape_cast %4 : vector<1x32xf32> to vector<32xf32>
    %6 = vector.extract_strided_slice %3 {offsets = [1, 0], sizes = [1, 32], strides = [1, 1]} : vector<6x32xf32> to vector<1x32xf32>
    %7 = vector.shape_cast %6 : vector<1x32xf32> to vector<32xf32>
    %cst = arith.constant dense<0.000000e+00> : vector<8xf32>
    %8 = vector.multi_reduction <add>, %1, %cst [1] : vector<8x32xf32> to vector<8xf32>
    %9 = vector.shape_cast %8 : vector<8xf32> to vector<8x1xf32>
    %cst_5 = arith.constant 3.200000e+01 : f32
    %10 = vector.broadcast %cst_5 : f32 to vector<8x1xf32>
    %11 = arith.divf %9, %10 : vector<8x1xf32>
    %12 = arith.mulf %1, %1 : vector<8x32xf32>
    %cst_6 = arith.constant dense<0.000000e+00> : vector<8xf32>
    %13 = vector.multi_reduction <add>, %12, %cst_6 [1] : vector<8x32xf32> to vector<8xf32>
    %14 = vector.shape_cast %13 : vector<8xf32> to vector<8x1xf32>
    %cst_7 = arith.constant 3.200000e+01 : f32
    %15 = vector.broadcast %cst_7 : f32 to vector<8x1xf32>
    %16 = arith.divf %14, %15 : vector<8x1xf32>
    %17 = arith.mulf %11, %11 : vector<8x1xf32>
    %18 = arith.subf %16, %17 : vector<8x1xf32>
    %19 = vector.broadcast %11 : vector<8x1xf32> to vector<8x32xf32>
    %20 = arith.subf %1, %19 : vector<8x32xf32>
    %cst_8 = arith.constant 9.99999997E-7 : f32
    %21 = vector.broadcast %cst_8 : f32 to vector<8x1xf32>
    %22 = arith.addf %18, %21 : vector<8x1xf32>
    %23 = math.rsqrt %22 : vector<8x1xf32>
    %24 = vector.broadcast %23 : vector<8x1xf32> to vector<8x32xf32>
    %25 = arith.mulf %20, %24 : vector<8x32xf32>
    %cst_9 = arith.constant 1.000000e+00 : f32
    %26 = vector.broadcast %cst_9 : f32 to vector<32xf32>
    %27 = arith.addf %26, %7 : vector<32xf32>
    %28 = vector.shape_cast %27 : vector<32xf32> to vector<1x32xf32>
    %29 = vector.broadcast %28 : vector<1x32xf32> to vector<8x32xf32>
    %30 = arith.mulf %25, %29 : vector<8x32xf32>
    %31 = vector.shape_cast %5 : vector<32xf32> to vector<1x32xf32>
    %32 = vector.broadcast %31 : vector<1x32xf32> to vector<8x32xf32>
    %33 = arith.addf %30, %32 : vector<8x32xf32>
    %34 = arith.truncf %33 : vector<8x32xf32> to vector<8x32xbf16>
    %c0_10 = arith.constant 0 : index
    %c0_11 = arith.constant 0 : index
    %35 = vector.load %arg4[%c0_10, %c0_11] : memref<32x1536xbf16, #tpu.memory_space<vmem>>, vector<32x1536xbf16>
    %cst_12 = arith.constant dense<0.000000e+00> : vector<8x1536xf32>
    %36 = tpu.matmul %34, %35, %cst_12 {dimension_numbers = #tpu.dot_dimension_numbers<[1], [0], [0], [1], [0, 0, 1, 1], [], []>} : vector<8x32xbf16>, vector<32x1536xbf16>, vector<8x1536xf32> -> vector<8x1536xf32>
    %c0_13 = arith.constant 0 : index
    %c0_14 = arith.constant 0 : index
    %37 = vector.load %arg5[%c0_13, %c0_14] : memref<1x1536xf32, #tpu.memory_space<vmem>>, vector<1x1536xf32>
    %38 = vector.broadcast %37 : vector<1x1536xf32> to vector<8x1536xf32>
    %39 = arith.addf %36, %38 : vector<8x1536xf32>
    %40 = arith.truncf %39 : vector<8x1536xf32> to vector<8x1536xbf16>
    %41 = vector.extract_strided_slice %40 {offsets = [0, 0], sizes = [8, 128], strides = [1, 1]} : vector<8x1536xbf16> to vector<8x128xbf16>
    %c0_15 = arith.constant 0 : index
    %c0_16 = arith.constant 0 : index
    %c0_17 = arith.constant 0 : index
    %c0_18 = arith.constant 0 : index
    %42 = vector.load %arg6[%c0_15, %c0_16, %c0_17, %c0_18] : memref<1x4x8x128xbf16, #tpu.memory_space<vmem>>, vector<1x1x8x128xbf16>
    %43 = vector.shape_cast %42 : vector<1x1x8x128xbf16> to vector<8x128xbf16>
    %44 = vector.shape_cast %41 : vector<8x128xbf16> to vector<1x1x8x128xbf16>
    tpu.vector_store %arg6[%c0_15, %c0_16, %c0_17, %c0_18], %44 {strides = array<i32>} : memref<1x4x8x128xbf16, #tpu.memory_space<vmem>>, vector<1x1x8x128xbf16>,
    %45 = vector.extract_strided_slice %40 {offsets = [0, 512], sizes = [8, 128], strides = [1, 1]} : vector<8x1536xbf16> to vector<8x128xbf16>
    %c0_19 = arith.constant 0 : index
    %c0_20 = arith.constant 0 : index
    %c0_21 = arith.constant 0 : index
    %c0_22 = arith.constant 0 : index
    %46 = vector.load %arg7[%c0_19, %c0_20, %c0_21, %c0_22] : memref<1x4x8x128xbf16, #tpu.memory_space<vmem>>, vector<1x1x8x128xbf16>
    %47 = vector.shape_cast %46 : vector<1x1x8x128xbf16> to vector<8x128xbf16>
    %48 = vector.shape_cast %45 : vector<8x128xbf16> to vector<1x1x8x128xbf16>
    tpu.vector_store %arg7[%c0_19, %c0_20, %c0_21, %c0_22], %48 {strides = array<i32>} : memref<1x4x8x128xbf16, #tpu.memory_space<vmem>>, vector<1x1x8x128xbf16>,
    %49 = vector.extract_strided_slice %40 {offsets = [0, 1024], sizes = [8, 128], strides = [1, 1]} : vector<8x1536xbf16> to vector<8x128xbf16>
    %c0_23 = arith.constant 0 : index
    %c0_24 = arith.constant 0 : index
    %c0_25 = arith.constant 0 : index
    %c0_26 = arith.constant 0 : index
    %50 = vector.load %arg8[%c0_23, %c0_24, %c0_25, %c0_26] : memref<1x4x8x128xbf16, #tpu.memory_space<vmem>>, vector<1x1x8x128xbf16>
    %51 = vector.shape_cast %50 : vector<1x1x8x128xbf16> to vector<8x128xbf16>
    %52 = vector.shape_cast %49 : vector<8x128xbf16> to vector<1x1x8x128xbf16>
    tpu.vector_store %arg8[%c0_23, %c0_24, %c0_25, %c0_26], %52 {strides = array<i32>} : memref<1x4x8x128xbf16, #tpu.memory_space<vmem>>, vector<1x1x8x128xbf16>,
    %53 = vector.extract_strided_slice %40 {offsets = [0, 128], sizes = [8, 128], strides = [1, 1]} : vector<8x1536xbf16> to vector<8x128xbf16>
    %c0_27 = arith.constant 0 : index
    %c1 = arith.constant 1 : index
    %c0_28 = arith.constant 0 : index
    %c0_29 = arith.constant 0 : index
    %54 = vector.load %arg6[%c0_27, %c1, %c0_28, %c0_29] : memref<1x4x8x128xbf16, #tpu.memory_space<vmem>>, vector<1x1x8x128xbf16>
    %55 = vector.shape_cast %54 : vector<1x1x8x128xbf16> to vector<8x128xbf16>
    %56 = vector.shape_cast %53 : vector<8x128xbf16> to vector<1x1x8x128xbf16>
    tpu.vector_store %arg6[%c0_27, %c1, %c0_28, %c0_29], %56 {strides = array<i32>} : memref<1x4x8x128xbf16, #tpu.memory_space<vmem>>, vector<1x1x8x128xbf16>,
    %57 = vector.extract_strided_slice %40 {offsets = [0, 640], sizes = [8, 128], strides = [1, 1]} : vector<8x1536xbf16> to vector<8x128xbf16>
    %c0_30 = arith.constant 0 : index
    %c1_31 = arith.constant 1 : index
    %c0_32 = arith.constant 0 : index
    %c0_33 = arith.constant 0 : index
    %58 = vector.load %arg7[%c0_30, %c1_31, %c0_32, %c0_33] : memref<1x4x8x128xbf16, #tpu.memory_space<vmem>>, vector<1x1x8x128xbf16>
    %59 = vector.shape_cast %58 : vector<1x1x8x128xbf16> to vector<8x128xbf16>
    %60 = vector.shape_cast %57 : vector<8x128xbf16> to vector<1x1x8x128xbf16>
    tpu.vector_store %arg7[%c0_30, %c1_31, %c0_32, %c0_33], %60 {strides = array<i32>} : memref<1x4x8x128xbf16, #tpu.memory_space<vmem>>, vector<1x1x8x128xbf16>,
    %61 = vector.extract_strided_slice %40 {offsets = [0, 1152], sizes = [8, 128], strides = [1, 1]} : vector<8x1536xbf16> to vector<8x128xbf16>
    %c0_34 = arith.constant 0 : index
    %c1_35 = arith.constant 1 : index
    %c0_36 = arith.constant 0 : index
    %c0_37 = arith.constant 0 : index
    %62 = vector.load %arg8[%c0_34, %c1_35, %c0_36, %c0_37] : memref<1x4x8x128xbf16, #tpu.memory_space<vmem>>, vector<1x1x8x128xbf16>
    %63 = vector.shape_cast %62 : vector<1x1x8x128xbf16> to vector<8x128xbf16>
    %64 = vector.shape_cast %61 : vector<8x128xbf16> to vector<1x1x8x128xbf16>
    tpu.vector_store %arg8[%c0_34, %c1_35, %c0_36, %c0_37], %64 {strides = array<i32>} : memref<1x4x8x128xbf16, #tpu.memory_space<vmem>>, vector<1x1x8x128xbf16>,
    %65 = vector.extract_strided_slice %40 {offsets = [0, 256], sizes = [8, 128], strides = [1, 1]} : vector<8x1536xbf16> to vector<8x128xbf16>
    %c0_38 = arith.constant 0 : index
    %c2 = arith.constant 2 : index
    %c0_39 = arith.constant 0 : index
    %c0_40 = arith.constant 0 : index
    %66 = vector.load %arg6[%c0_38, %c2, %c0_39, %c0_40] : memref<1x4x8x128xbf16, #tpu.memory_space<vmem>>, vector<1x1x8x128xbf16>
    %67 = vector.shape_cast %66 : vector<1x1x8x128xbf16> to vector<8x128xbf16>
    %68 = vector.shape_cast %65 : vector<8x128xbf16> to vector<1x1x8x128xbf16>
    tpu.vector_store %arg6[%c0_38, %c2, %c0_39, %c0_40], %68 {strides = array<i32>} : memref<1x4x8x128xbf16, #tpu.memory_space<vmem>>, vector<1x1x8x128xbf16>,
    %69 = vector.extract_strided_slice %40 {offsets = [0, 768], sizes = [8, 128], strides = [1, 1]} : vector<8x1536xbf16> to vector<8x128xbf16>
    %c0_41 = arith.constant 0 : index
    %c2_42 = arith.constant 2 : index
    %c0_43 = arith.constant 0 : index
    %c0_44 = arith.constant 0 : index
    %70 = vector.load %arg7[%c0_41, %c2_42, %c0_43, %c0_44] : memref<1x4x8x128xbf16, #tpu.memory_space<vmem>>, vector<1x1x8x128xbf16>
    %71 = vector.shape_cast %70 : vector<1x1x8x128xbf16> to vector<8x128xbf16>
    %72 = vector.shape_cast %69 : vector<8x128xbf16> to vector<1x1x8x128xbf16>
    tpu.vector_store %arg7[%c0_41, %c2_42, %c0_43, %c0_44], %72 {strides = array<i32>} : memref<1x4x8x128xbf16, #tpu.memory_space<vmem>>, vector<1x1x8x128xbf16>,
    %73 = vector.extract_strided_slice %40 {offsets = [0, 1280], sizes = [8, 128], strides = [1, 1]} : vector<8x1536xbf16> to vector<8x128xbf16>
    %c0_45 = arith.constant 0 : index
    %c2_46 = arith.constant 2 : index
    %c0_47 = arith.constant 0 : index
    %c0_48 = arith.constant 0 : index
    %74 = vector.load %arg8[%c0_45, %c2_46, %c0_47, %c0_48] : memref<1x4x8x128xbf16, #tpu.memory_space<vmem>>, vector<1x1x8x128xbf16>
    %75 = vector.shape_cast %74 : vector<1x1x8x128xbf16> to vector<8x128xbf16>
    %76 = vector.shape_cast %73 : vector<8x128xbf16> to vector<1x1x8x128xbf16>
    tpu.vector_store %arg8[%c0_45, %c2_46, %c0_47, %c0_48], %76 {strides = array<i32>} : memref<1x4x8x128xbf16, #tpu.memory_space<vmem>>, vector<1x1x8x128xbf16>,
    %77 = vector.extract_strided_slice %40 {offsets = [0, 384], sizes = [8, 128], strides = [1, 1]} : vector<8x1536xbf16> to vector<8x128xbf16>
    %c0_49 = arith.constant 0 : index
    %c3 = arith.constant 3 : index
    %c0_50 = arith.constant 0 : index
    %c0_51 = arith.constant 0 : index
    %78 = vector.load %arg6[%c0_49, %c3, %c0_50, %c0_51] : memref<1x4x8x128xbf16, #tpu.memory_space<vmem>>, vector<1x1x8x128xbf16>
    %79 = vector.shape_cast %78 : vector<1x1x8x128xbf16> to vector<8x128xbf16>
    %80 = vector.shape_cast %77 : vector<8x128xbf16> to vector<1x1x8x128xbf16>
    tpu.vector_store %arg6[%c0_49, %c3, %c0_50, %c0_51], %80 {strides = array<i32>} : memref<1x4x8x128xbf16, #tpu.memory_space<vmem>>, vector<1x1x8x128xbf16>,
    %81 = vector.extract_strided_slice %40 {offsets = [0, 896], sizes = [8, 128], strides = [1, 1]} : vector<8x1536xbf16> to vector<8x128xbf16>
    %c0_52 = arith.constant 0 : index
    %c3_53 = arith.constant 3 : index
    %c0_54 = arith.constant 0 : index
    %c0_55 = arith.constant 0 : index
    %82 = vector.load %arg7[%c0_52, %c3_53, %c0_54, %c0_55] : memref<1x4x8x128xbf16, #tpu.memory_space<vmem>>, vector<1x1x8x128xbf16>
    %83 = vector.shape_cast %82 : vector<1x1x8x128xbf16> to vector<8x128xbf16>
    %84 = vector.shape_cast %81 : vector<8x128xbf16> to vector<1x1x8x128xbf16>
    tpu.vector_store %arg7[%c0_52, %c3_53, %c0_54, %c0_55], %84 {strides = array<i32>} : memref<1x4x8x128xbf16, #tpu.memory_space<vmem>>, vector<1x1x8x128xbf16>,
    %85 = vector.extract_strided_slice %40 {offsets = [0, 1408], sizes = [8, 128], strides = [1, 1]} : vector<8x1536xbf16> to vector<8x128xbf16>
    %c0_56 = arith.constant 0 : index
    %c3_57 = arith.constant 3 : index
    %c0_58 = arith.constant 0 : index
    %c0_59 = arith.constant 0 : index
    %86 = vector.load %arg8[%c0_56, %c3_57, %c0_58, %c0_59] : memref<1x4x8x128xbf16, #tpu.memory_space<vmem>>, vector<1x1x8x128xbf16>
    %87 = vector.shape_cast %86 : vector<1x1x8x128xbf16> to vector<8x128xbf16>
    %88 = vector.shape_cast %85 : vector<8x128xbf16> to vector<1x1x8x128xbf16>
    tpu.vector_store %arg8[%c0_56, %c3_57, %c0_58, %c0_59], %88 {strides = array<i32>} : memref<1x4x8x128xbf16, #tpu.memory_space<vmem>>, vector<1x1x8x128xbf16>,
    return
  }
  func.func @transform_0(%arg0: i32, %arg1: i32) -> (i32, i32, i32) {
    %c0_i32 = arith.constant 0 : i32
    %c0_i32_0 = arith.constant 0 : i32
    return %arg0, %arg1, %c0_i32 : i32, i32, i32
  }
  func.func @transform_1(%arg0: i32, %arg1: i32) -> (i32, i32, i32) {
    %c0_i32 = arith.constant 0 : i32
    %c0_i32_0 = arith.constant 0 : i32
    %c0_i32_1 = arith.constant 0 : i32
    return %arg0, %c0_i32, %c0_i32_0 : i32, i32, i32
  }
  func.func @transform_2(%arg0: i32, %arg1: i32) -> (i32, i32) {
    %c0_i32 = arith.constant 0 : i32
    %c0_i32_0 = arith.constant 0 : i32
    %c0_i32_1 = arith.constant 0 : i32
    return %c0_i32, %c0_i32_0 : i32, i32
  }
  func.func @transform_3(%arg0: i32, %arg1: i32) -> (i32, i32) {
    %c0_i32 = arith.constant 0 : i32
    %c0_i32_0 = arith.constant 0 : i32
    %c0_i32_1 = arith.constant 0 : i32
    return %c0_i32, %c0_i32_0 : i32, i32
  }
  func.func @transform_4(%arg0: i32, %arg1: i32) -> (i32, i32, i32, i32) {
    %c0_i32 = arith.constant 0 : i32
    %c0_i32_0 = arith.constant 0 : i32
    %c0_i32_1 = arith.constant 0 : i32
    return %arg0, %c0_i32, %arg1, %c0_i32_0 : i32, i32, i32, i32
  }
  func.func @transform_5(%arg0: i32, %arg1: i32) -> (i32, i32, i32, i32) {
    %c0_i32 = arith.constant 0 : i32
    %c0_i32_0 = arith.constant 0 : i32
    %c0_i32_1 = arith.constant 0 : i32
    return %arg0, %c0_i32, %arg1, %c0_i32_0 : i32, i32, i32, i32
  }
  func.func @transform_6(%arg0: i32, %arg1: i32) -> (i32, i32, i32, i32) {
    %c0_i32 = arith.constant 0 : i32
    %c0_i32_0 = arith.constant 0 : i32
    %c0_i32_1 = arith.constant 0 : i32
    return %arg0, %c0_i32, %arg1, %c0_i32_0 : i32, i32, i32, i32
  }
}

</mosaic_0001>

<llo_original>
// kernel: tpu_custom_call.1
$region0: #{tpu_custom_call.1}
  #allocation0 [shape = 'u32[]', space=smem, size = 0x4, offset = 0x4, fixed_abs, tag = 'smem constant byte address 0x4 - core index']
  #allocation1 [shape = 'u32[144,128]{1,0:T(1,128)}', space=vmem, size = 0x12000, scoped, tag = 'internal scratch']
  %s0 = inlined_call_operand.vmem [shape: f32[2,8,32], index: 0, kind: input, shape index: {}]
  %s1 = inlined_call_operand.vmem [shape: f32[2,6,32], index: 1, kind: input, shape index: {}]
  %s2 = inlined_call_operand.hbm [shape: bf16[32,1536], index: 2, kind: input, shape index: {}]
  %s3 = inlined_call_operand.vmem [shape: f32[1,1536], index: 3, kind: input, shape index: {}]
  %s4 = inlined_call_operand.hbm [shape: bf16[2,4,8,128], index: 4, kind: output, shape index: {0}]
  %s5 = inlined_call_operand.hbm [shape: bf16[2,4,8,128], index: 5, kind: output, shape index: {1}]
  %s6 = inlined_call_operand.hbm [shape: bf16[2,4,8,128], index: 6, kind: output, shape index: {2}]
  %7 = xla_tuple %s4, %s5, %s6
  %s8 = sld [smem:[#allocation0]]
  $region69: #{tpu_custom_call.1} parent=0
    _
  %s10 = ssub.s32 1, %s8
  %s11 = scalar_select 0, %s10, %s8
  $region1: #{tpu_custom_call.1} parent=0
    #allocation2 [shape = 'u8[98304]{0}', space=vmem, size = 0x18000, scoped, tag = 'input window, operand 2, single buffered']
    #allocation3 [shape = 's32[2]{0}', space=sflag, size = 0x8, scoped, tag = 'scoped memory for tpu_custom_call.1']
    #allocation4 [shape = 's32[2]{0}', space=sflag, size = 0x8, scoped, tag = 'scoped memory for tpu_custom_call.1']
    #allocation5 [shape = 'u8[16384]{0}', space=vmem, size = 0x4000, scoped, tag = 'output window, operand 0']
    #allocation6 [shape = 'u8[16384]{0}', space=vmem, size = 0x4000, scoped, tag = 'output window, operand 1']
    #allocation7 [shape = 's32[2]{0}', space=sflag, size = 0x8, scoped, tag = 'scoped memory for tpu_custom_call.1']
    #allocation8 [shape = 'u8[16384]{0}', space=vmem, size = 0x4000, scoped, tag = 'output window, operand 2']
    %12 = vsyncpa [#allocation3], 0
    %13 = vsyncpa [#allocation4], 0
    %s14 = scalar_lea.sflag [#allocation4], 1
    %15 = vsyncpa %s14, 0
    %16 = vsyncpa [#allocation7], 0
    %s17 = scalar_lea.sflag [#allocation7], 1
    %18 = vsyncpa %s17, 0
    loop: start=0, step=1, limit=4
    $region2: #{tpu_custom_call.1} parent=1 // loop_pre_header
      _
    $region3: #{tpu_custom_call.1} parent=1 // loop_header
      %s20 = sphi 0, %s24
      %p21 = scmp.ge.s32.totalorder %s20, 4
      %s27 = sphi 0, %s39
      %s28 = sphi 0, %s35
      %s29 = sphi 0, %s27
      %s30 = sphi 0, %s28
      %s31 = sphi 0, %s29
      %s32 = sphi 0, %s30
      %s44 = sphi 0, %s46
      %s47 = sphi 0, %s44
      %s48 = sphi 0, %s47
      %s64 = sphi 0, %s48
      %s70 = sphi 0, %s72
      %s73 = sphi 0, %s70
      %s74 = sphi 0, %s73
      %s90 = sphi 0, %s74
      %s94 = sphi 0, %s94
      %s96 = sphi 0, %s94
      %s97 = sphi 0, %s96
      %s111 = sphi 0, %s97
      %s115 = sphi 0, %s115
      %s117 = sphi 0, %s115
      %s118 = sphi 0, %s117
      %s132 = sphi 0, %s118
      %s140 = sphi 0, %s142
      %s143 = sphi 0, %s140
      %s144 = sphi 0, %s143
      %s160 = sphi 0, %s144
      %s168 = sphi 0, %s170
      %s171 = sphi 0, %s168
      %s172 = sphi 0, %s171
      %s188 = sphi 0, %s172
      %s196 = sphi 0, %s198
      %s199 = sphi 0, %s196
      %s200 = sphi 0, %s199
      %s216 = sphi 0, %s200
    $region4: #{tpu_custom_call.1} parent=1 // loop_header_branch
      %23 = sbr.rel (%p21) target = $region8
    $region5: #{tpu_custom_call.1} parent=1 // loop_body
      %s25 = ssub.s32 %s20, 1
      %s26 = ssub.s32 %s20, 2
      %s33 = sadd.s32 1, %s28
      %p34 = scmp.ge.s32.totalorder %s33, 1
      %s35 = scalar_select %p34, 0, %s33
      %s36 = sadd.s32 1, %s27
      %s37 = scalar_select %p34, %s36, %s27
      %p38 = scmp.ge.s32.totalorder %s37, 2
      %s39 = scalar_select %p38, 0, %s37
      %s40 = ssub.s32 %s27, %s39
      %s41 = ssub.s32 %s28, %s35
      %s42 = sor.u32 %s40, %s41
      %p43 = scmp.eq.s32.totalorder %s42, 0
      %s45 = sadd.s32 %s44, 1
      %s46 = scalar_select %p43, %s44, %s45
      %p49 = pneg %p43
      %p50 = scmp.eq.s32.totalorder %s20, 1
      %p51 = por %p49, %p50
      %p52 = scmp.ne.s32.totalorder %s44, %s47
      %p53 = scmp.eq.s32.totalorder %s20, 0
      %p54 = por %p52, %p53
      %p55 = scmp.ne.s32.totalorder %s44, %s47
      %p56 = scmp.eq.s32.totalorder %s25, 1
      %p57 = por %p55, %p56
      %p58 = scmp.ne.s32.totalorder %s47, %s48
      %p59 = scmp.eq.s32.totalorder %s25, 0
      %p60 = por %p58, %p59
      %p61 = scmp.ne.s32.totalorder %s47, %s48
      %p62 = scmp.eq.s32.totalorder %s26, 1
      %p63 = por %p61, %p62
      %p65 = scmp.ne.s32.totalorder %s48, %s64
      %p66 = scmp.eq.s32.totalorder %s26, 0
      %p67 = por %p65, %p66
      %s68 = ssub.s32 %s27, %s39
      %p69 = scmp.eq.s32.totalorder %s68, 0
      %s71 = sadd.s32 %s70, 1
      %s72 = scalar_select %p69, %s70, %s71
      %p75 = pneg %p69
      %p76 = scmp.eq.s32.totalorder %s20, 1
      %p77 = por %p75, %p76
      %p78 = scmp.ne.s32.totalorder %s70, %s73
      %p79 = scmp.eq.s32.totalorder %s20, 0
      %p80 = por %p78, %p79
      %p81 = scmp.ne.s32.totalorder %s70, %s73
      %p82 = scmp.eq.s32.totalorder %s25, 1
      %p83 = por %p81, %p82
      %p84 = scmp.ne.s32.totalorder %s73, %s74
      %p85 = scmp.eq.s32.totalorder %s25, 0
      %p86 = por %p84, %p85
      %p87 = scmp.ne.s32.totalorder %s73, %s74
      %p88 = scmp.eq.s32.totalorder %s26, 1
      %p89 = por %p87, %p88
      %p91 = scmp.ne.s32.totalorder %s74, %s90
      %p92 = scmp.eq.s32.totalorder %s26, 0
      %p93 = por %p91, %p92
      %s95 = sadd.s32 %s94, 1
      %p98 = scmp.eq.s32.totalorder %s20, 1
      %p99 = scmp.ne.s32.totalorder %s94, %s96
      %p100 = scmp.eq.s32.totalorder %s20, 0
      %p101 = por %p99, %p100
      %p102 = scmp.ne.s32.totalorder %s94, %s96
      %p103 = scmp.eq.s32.totalorder %s25, 1
      %p104 = por %p102, %p103
      %p105 = scmp.ne.s32.totalorder %s96, %s97
      %p106 = scmp.eq.s32.totalorder %s25, 0
      %p107 = por %p105, %p106
      %p108 = scmp.ne.s32.totalorder %s96, %s97
      %p109 = scmp.eq.s32.totalorder %s26, 1
      %p110 = por %p108, %p109
      %p112 = scmp.ne.s32.totalorder %s97, %s111
      %p113 = scmp.eq.s32.totalorder %s26, 0
      %p114 = por %p112, %p113
      %s116 = sadd.s32 %s115, 1
      %p119 = scmp.eq.s32.totalorder %s20, 1
      %p120 = scmp.ne.s32.totalorder %s115, %s117
      %p121 = scmp.eq.s32.totalorder %s20, 0
      %p122 = por %p120, %p121
      %p123 = scmp.ne.s32.totalorder %s115, %s117
      %p124 = scmp.eq.s32.totalorder %s25, 1
      %p125 = por %p123, %p124
      %p126 = scmp.ne.s32.totalorder %s117, %s118
      %p127 = scmp.eq.s32.totalorder %s25, 0
      %p128 = por %p126, %p127
      %p129 = scmp.ne.s32.totalorder %s117, %s118
      %p130 = scmp.eq.s32.totalorder %s26, 1
      %p131 = por %p129, %p130
      %p133 = scmp.ne.s32.totalorder %s118, %s132
      %p134 = scmp.eq.s32.totalorder %s26, 0
      %p135 = por %p133, %p134
      %s136 = ssub.s32 %s27, %s39
      %s137 = ssub.s32 %s28, %s35
      %s138 = sor.u32 %s136, %s137
      %p139 = scmp.eq.s32.totalorder %s138, 0
      %s141 = sadd.s32 %s140, 1
      %s142 = scalar_select %p139, %s140, %s141
      %p145 = pneg %p139
      %p146 = scmp.eq.s32.totalorder %s20, 1
      %p147 = por %p145, %p146
      %p148 = scmp.ne.s32.totalorder %s140, %s143
      %p149 = scmp.eq.s32.totalorder %s20, 0
      %p150 = por %p148, %p149
      %p151 = scmp.ne.s32.totalorder %s140, %s143
      %p152 = scmp.eq.s32.totalorder %s25, 1
      %p153 = por %p151, %p152
      %p154 = scmp.ne.s32.totalorder %s143, %s144
      %p155 = scmp.eq.s32.totalorder %s25, 0
      %p156 = por %p154, %p155
      %p157 = scmp.ne.s32.totalorder %s143, %s144
      %p158 = scmp.eq.s32.totalorder %s26, 1
      %p159 = por %p157, %p158
      %p161 = scmp.ne.s32.totalorder %s144, %s160
      %p162 = scmp.eq.s32.totalorder %s26, 0
      %p163 = por %p161, %p162
      %s164 = ssub.s32 %s27, %s39
      %s165 = ssub.s32 %s28, %s35
      %s166 = sor.u32 %s164, %s165
      %p167 = scmp.eq.s32.totalorder %s166, 0
      %s169 = sadd.s32 %s168, 1
      %s170 = scalar_select %p167, %s168, %s169
      %p173 = pneg %p167
      %p174 = scmp.eq.s32.totalorder %s20, 1
      %p175 = por %p173, %p174
      %p176 = scmp.ne.s32.totalorder %s168, %s171
      %p177 = scmp.eq.s32.totalorder %s20, 0
      %p178 = por %p176, %p177
      %p179 = scmp.ne.s32.totalorder %s168, %s171
      %p180 = scmp.eq.s32.totalorder %s25, 1
      %p181 = por %p179, %p180
      %p182 = scmp.ne.s32.totalorder %s171, %s172
      %p183 = scmp.eq.s32.totalorder %s25, 0
      %p184 = por %p182, %p183
      %p185 = scmp.ne.s32.totalorder %s171, %s172
      %p186 = scmp.eq.s32.totalorder %s26, 1
      %p187 = por %p185, %p186
      %p189 = scmp.ne.s32.totalorder %s172, %s188
      %p190 = scmp.eq.s32.totalorder %s26, 0
      %p191 = por %p189, %p190
      %s192 = ssub.s32 %s27, %s39
      %s193 = ssub.s32 %s28, %s35
      %s194 = sor.u32 %s192, %s193
      %p195 = scmp.eq.s32.totalorder %s194, 0
      %s197 = sadd.s32 %s196, 1
      %s198 = scalar_select %p195, %s196, %s197
      %p201 = pneg %p195
      %p202 = scmp.eq.s32.totalorder %s20, 1
      %p203 = por %p201, %p202
      %p204 = scmp.ne.s32.totalorder %s196, %s199
      %p205 = scmp.eq.s32.totalorder %s20, 0
      %p206 = por %p204, %p205
      %p207 = scmp.ne.s32.totalorder %s196, %s199
      %p208 = scmp.eq.s32.totalorder %s25, 1
      %p209 = por %p207, %p208
      %p210 = scmp.ne.s32.totalorder %s199, %s200
      %p211 = scmp.eq.s32.totalorder %s25, 0
      %p212 = por %p210, %p211
      %p213 = scmp.ne.s32.totalorder %s199, %s200
      %p214 = scmp.eq.s32.totalorder %s26, 1
      %p215 = por %p213, %p214
      %p217 = scmp.ne.s32.totalorder %s200, %s216
      %p218 = scmp.eq.s32.totalorder %s26, 0
      %p219 = por %p217, %p218
      %p220 = scmp.le.s32.totalorder 1, %s20
      %p221 = scmp.lt.s32.totalorder %s20, 3
      %p222 = pnand %p220, %p221
      %p223 = pneg %p222
      // Predicated region
      $region9: #{tpu_custom_call.1} parent=5 // pred_check
        _
      $region10: #{tpu_custom_call.1} parent=5 // pred_check_branch
        %225 = sbr.rel (%p222) target = $region12
      $region11: #{tpu_custom_call.1} parent=5 // pred_region
        %s226 = ssub.s32 %s20, 1
        // Predicated region
        $region13: #{tpu_custom_call.1} parent=11 // pred_check
          %p227 = pneg %p107
        $region14: #{tpu_custom_call.1} parent=11 // pred_check_branch
          %229 = sbr.rel (%p227) target = $region16
        $region15: #{tpu_custom_call.1} parent=11 // pred_region
          %s231 = ssub.s32 3072, 3072
          %232 = vsyncadd [#allocation3], %s231
          %s233 = sshll.u32 [#allocation2], 4
          %s234 = int_to_ptr.vmem [resolvable:$true] %s233
          %239 = dma.hbm_to_vmem [thread:$0]  %s2, 3072, %s234, [#allocation3], 768, 768, 48
        $region16: #{tpu_custom_call.1} parent=11 // pred_fallthru
          _
        // Predicated region
        $region17: #{tpu_custom_call.1} parent=11 // pred_check
          %p240 = pneg %p128
        $region18: #{tpu_custom_call.1} parent=11 // pred_check_branch
          %242 = sbr.rel (%p240) target = $region20
        $region19: #{tpu_custom_call.1} parent=11 // pred_region
          _
        $region20: #{tpu_custom_call.1} parent=11 // pred_fallthru
          _
      $region12: #{tpu_custom_call.1} parent=5 // pred_fallthru
        _
      %p243 = scmp.lt.s32.totalorder %s20, 2
      // Predicated region
      $region21: #{tpu_custom_call.1} parent=5 // pred_check
        %p244 = pneg %p243
      $region22: #{tpu_custom_call.1} parent=5 // pred_check_branch
        %246 = sbr.rel (%p244) target = $region24
      $region23: #{tpu_custom_call.1} parent=5 // pred_region
        // Predicated region
        $region25: #{tpu_custom_call.1} parent=23 // pred_check
          %p247 = pneg %p54
        $region26: #{tpu_custom_call.1} parent=23 // pred_check_branch
          %249 = sbr.rel (%p247) target = $region28
        $region27: #{tpu_custom_call.1} parent=23 // pred_region
          %p250 = scmp.lt.s32.totalorder %s27, 1
          %s251 = scalar_select %p250, %s27, 1
          %p252 = scmp.lt.s32.totalorder %s28, 0
          %s253 = scalar_select %p252, %s28, 0
          %s254 = sadd.s32 %s253, %s251
          %s255 = smul.addr %s254, 8
          %s256 = scalar_lea.vmem %s0, %s255
        $region28: #{tpu_custom_call.1} parent=23 // pred_fallthru
          _
        // Predicated region
        $region29: #{tpu_custom_call.1} parent=23 // pred_check
          %p257 = pneg %p80
        $region30: #{tpu_custom_call.1} parent=23 // pred_check_branch
          %259 = sbr.rel (%p257) target = $region32
        $region31: #{tpu_custom_call.1} parent=23 // pred_region
          %p260 = scmp.lt.s32.totalorder %s27, 1
          %s261 = scalar_select %p260, %s27, 1
          %s262 = smul.addr %s261, 8
          %s263 = scalar_lea.vmem %s1, %s262
        $region32: #{tpu_custom_call.1} parent=23 // pred_fallthru
          _
      $region24: #{tpu_custom_call.1} parent=5 // pred_fallthru
        _
      %p264 = scmp.le.s32.totalorder 1, %s20
      %p265 = scmp.lt.s32.totalorder %s20, 3
      %p266 = pnand %p264, %p265
      %p267 = pneg %p266
      // Predicated region
      $region33: #{tpu_custom_call.1} parent=5 // pred_check
        _
      $region34: #{tpu_custom_call.1} parent=5 // pred_check_branch
        %269 = sbr.rel (%p266) target = $region36
      $region35: #{tpu_custom_call.1} parent=5 // pred_region
        %s270 = ssub.s32 %s20, 1
        // Predicated region
        $region37: #{tpu_custom_call.1} parent=35 // pred_check
          %p271 = pneg %p107
        $region38: #{tpu_custom_call.1} parent=35 // pred_check_branch
          %273 = sbr.rel (%p271) target = $region40
        $region39: #{tpu_custom_call.1} parent=35 // pred_region
          %274 = dma.done [#allocation3], 3072
        $region40: #{tpu_custom_call.1} parent=35 // pred_fallthru
          _
        %p275 = scmp.lt.s32.totalorder %s29, 1
        %s276 = scalar_select %p275, %s29, 1
        %p277 = scmp.lt.s32.totalorder %s30, 0
        %s278 = scalar_select %p277, %s30, 0
        %s279 = sadd.s32 %s278, %s276
        %s280 = smul.addr %s279, 8
        %s281 = scalar_lea.vmem %s0, %s280
        %p282 = pneg %p60
        %p283 = pneg %p57
        %p284 = scmp.lt.s32.totalorder %s29, 1
        %s285 = scalar_select %p284, %s29, 1
        %s286 = smul.addr %s285, 8
        %s287 = scalar_lea.vmem %s1, %s286
        %p288 = pneg %p86
        %p289 = pneg %p83
        %p290 = pneg %p107
        %p291 = pneg %p104
        %p292 = pneg %p128
        %p293 = pneg %p125
        %p294 = pneg %p156
        %p295 = pneg %p153
        %s296 = sand.u32 %s143, 1
        %s297 = scalar_lea.sflag [#allocation4], %s296
        %s298 = sand.u32 %s143, 1
        %s299 = smul.addr %s298, 16
        %s300 = scalar_lea.vmem [#allocation5], %s299
        %p301 = pneg %p184
        %p302 = pneg %p181
        %s303 = sand.u32 %s25, 1
        %s304 = scalar_lea.sflag [#allocation7], %s303
        %s305 = sand.u32 %s171, 1
        %s306 = smul.addr %s305, 16
        %s307 = scalar_lea.vmem [#allocation6], %s306
        %p308 = pneg %p212
        %p309 = pneg %p209
        %s310 = sand.u32 %s25, 1
        %s311 = scalar_lea.sflag [#allocation7], %s310
        %s312 = sand.u32 %s199, 1
        %s313 = smul.addr %s312, 16
        %s314 = scalar_lea.vmem [#allocation8], %s313
        %p315 = scmp.lt.s32.totalorder %s29, 1
        %s316 = scalar_select %p315, %s29, 1
        %p317 = scmp.lt.s32.totalorder %s30, 0
        %s318 = scalar_select %p317, %s30, 0
        %s319 = sadd.s32 %s318, %s316
        %s320 = smul.addr %s319, 8
        %s321 = scalar_lea.vmem %s0, %s320
        %p322 = scmp.lt.s32.totalorder %s29, 1
        %s323 = scalar_select %p322, %s29, 1
        %s324 = smul.addr %s323, 8
        %s325 = scalar_lea.vmem %s1, %s324
        %v327 = vld [vmem:[%s321] sm:$0xff]
        %v328 = vld [vmem:[%s325] sm:$0x3f]
        %vm329 = vcmask 261120
        %v330 = vsel %vm329, %v327, 0.0
        %331 = vadd.xlane.f32.xlu0 %v330
        %v332 = vpop.xlane.xlu0 %331
        %v333 = vrcp.pop 32.0
        %v334 = vmul.f32 %v332, %v333
        %v335 = vmul.f32 %v327, %v327
        %v336 = vsel %vm329, %v335, 0.0
        %337 = vadd.xlane.f32.xlu0 %v336
        %v338 = vpop.xlane.xlu0 %337
        %v339 = vmul.f32 %v338, %v333
        %v340 = vmul.f32 %v334, %v334
        %v341 = vsub.f32 %v339, %v340
        %v342 = vsub.f32 %v327, %v334
        %v343 = vadd.f32 %v341, 1e-06
        %v344 = vrsqrt.pop %v343
        %v345 = vmul.f32 %v342, %v344
        %v346 = vadd.f32 %v328, 1.0
        %v347 = vlaneseq
        %v348 = vshrl.u32 %v347, 7
        %v349 = vsub.s32 1, %v348
        %v350 = vrot.slane %v346, %v349
        %v351 = vmul.f32 %v345, %v350
        %v352 = vlaneseq
        %v353 = vshrl.u32 %v352, 7
        %v354 = vsub.s32 0, %v353
        %v355 = vrot.slane %v328, %v354
        %v356 = vadd.f32 %v351, %v355
        %v357 = vpack.c.bf16 %v356, %v356
        %v358 = vld [vmem:[#allocation2] sm:$0xff]
        %v359 = vld [vmem:[#allocation2 + $0x8] sm:$0xff]
        %v360 = vld [vmem:[#allocation2 + $0x10] sm:$0xff]
        %v361 = vld [vmem:[#allocation2 + $0x18] sm:$0xff]
        %v362 = vld [vmem:[#allocation2 + $0x20] sm:$0xff]
        %v363 = vld [vmem:[#allocation2 + $0x28] sm:$0xff]
        %v364 = vld [vmem:[#allocation2 + $0x30] sm:$0xff]
        %v365 = vld [vmem:[#allocation2 + $0x38] sm:$0xff]
        %v366 = vld [vmem:[#allocation2 + $0x40] sm:$0xff]
        %v367 = vld [vmem:[#allocation2 + $0x48] sm:$0xff]
        %v368 = vld [vmem:[#allocation2 + $0x50] sm:$0xff]
        %v369 = vld [vmem:[#allocation2 + $0x58] sm:$0xff]
        %v370 = vld [vmem:[#allocation2 + $0x60] sm:$0xff]
        %v371 = vld [vmem:[#allocation2 + $0x68] sm:$0xff]
        %v372 = vld [vmem:[#allocation2 + $0x70] sm:$0xff]
        %v373 = vld [vmem:[#allocation2 + $0x78] sm:$0xff]
        %v374 = vld [vmem:[#allocation2 + $0x80] sm:$0xff]
        %v375 = vld [vmem:[#allocation2 + $0x88] sm:$0xff]
        %v376 = vld [vmem:[#allocation2 + $0x90] sm:$0xff]
        %v377 = vld [vmem:[#allocation2 + $0x98] sm:$0xff]
        %v378 = vld [vmem:[#allocation2 + $0xa0] sm:$0xff]
        %v379 = vld [vmem:[#allocation2 + $0xa8] sm:$0xff]
        %v380 = vld [vmem:[#allocation2 + $0xb0] sm:$0xff]
        %v381 = vld [vmem:[#allocation2 + $0xb8] sm:$0xff]
        %v382 = vld [vmem:[%s3] sm:$0xff]
        %v383 = vld [vmem:[%s3 + $0x8] sm:$0xf]
        %v386 = vlaneseq
        %v387 = vshrl.u32 %v386, 7
        %v388 = vsub.s32 0, %v387
        %v389 = vrot.slane %v382, %v388
        %v390 = vlaneseq
        %v391 = vshrl.u32 %v390, 7
        %v392 = vsub.s32 1, %v391
        %v393 = vrot.slane %v382, %v392
        %v394 = vlaneseq
        %v395 = vshrl.u32 %v394, 7
        %v396 = vsub.s32 2, %v395
        %v397 = vrot.slane %v382, %v396
        %v398 = vlaneseq
        %v399 = vshrl.u32 %v398, 7
        %v400 = vsub.s32 3, %v399
        %v401 = vrot.slane %v382, %v400
        %v402 = vlaneseq
        %v403 = vshrl.u32 %v402, 7
        %v404 = vsub.s32 4, %v403
        %v405 = vrot.slane %v382, %v404
        %v406 = vlaneseq
        %v407 = vshrl.u32 %v406, 7
        %v408 = vsub.s32 5, %v407
        %v409 = vrot.slane %v382, %v408
        %v410 = vlaneseq
        %v411 = vshrl.u32 %v410, 7
        %v412 = vsub.s32 6, %v411
        %v413 = vrot.slane %v382, %v412
        %v414 = vlaneseq
        %v415 = vshrl.u32 %v414, 7
        %v416 = vsub.s32 7, %v415
        %v417 = vrot.slane %v382, %v416
        %v418 = vlaneseq
        %v419 = vshrl.u32 %v418, 7
        %v420 = vsub.s32 0, %v419
        %v421 = vrot.slane %v383, %v420
        %v422 = vlaneseq
        %v423 = vshrl.u32 %v422, 7
        %v424 = vsub.s32 1, %v423
        %v425 = vrot.slane %v383, %v424
        %v426 = vlaneseq
        %v427 = vshrl.u32 %v426, 7
        %v428 = vsub.s32 2, %v427
        %v429 = vrot.slane %v383, %v428
        %v430 = vlaneseq
        %v431 = vshrl.u32 %v430, 7
        %v432 = vsub.s32 3, %v431
        %v433 = vrot.slane %v383, %v432
        %v470 = vunpack.c.l.b16 %v358
        %v471 = vunpack.c.h.b16 %v358
        %v472 = vunpack.c.l.b16 %v359
        %v473 = vunpack.c.h.b16 %v359
        %v474 = vunpack.c.l.b16 %v360
        %v475 = vunpack.c.h.b16 %v360
        %v476 = vunpack.c.l.b16 %v361
        %v477 = vunpack.c.h.b16 %v361
        %v478 = vunpack.c.l.b16 %v362
        %v479 = vunpack.c.h.b16 %v362
        %v480 = vunpack.c.l.b16 %v363
        %v481 = vunpack.c.h.b16 %v363
        %v482 = vunpack.c.l.b16 %v364
        %v483 = vunpack.c.h.b16 %v364
        %v484 = vunpack.c.l.b16 %v365
        %v485 = vunpack.c.h.b16 %v365
        %v486 = vunpack.c.l.b16 %v366
        %v487 = vunpack.c.h.b16 %v366
        %v488 = vunpack.c.l.b16 %v367
        %v489 = vunpack.c.h.b16 %v367
        %v490 = vunpack.c.l.b16 %v368
        %v491 = vunpack.c.h.b16 %v368
        %v492 = vunpack.c.l.b16 %v369
        %v493 = vunpack.c.h.b16 %v369
        %v494 = vunpack.c.l.b16 %v370
        %v495 = vunpack.c.h.b16 %v370
        %v496 = vunpack.c.l.b16 %v371
        %v497 = vunpack.c.h.b16 %v371
        %v498 = vunpack.c.l.b16 %v372
        %v499 = vunpack.c.h.b16 %v372
        %v500 = vunpack.c.l.b16 %v373
        %v501 = vunpack.c.h.b16 %v373
        %v502 = vunpack.c.l.b16 %v374
        %v503 = vunpack.c.h.b16 %v374
        %v504 = vunpack.c.l.b16 %v375
        %v505 = vunpack.c.h.b16 %v375
        %v506 = vunpack.c.l.b16 %v376
        %v507 = vunpack.c.h.b16 %v376
        %v508 = vunpack.c.l.b16 %v377
        %v509 = vunpack.c.h.b16 %v377
        %v510 = vunpack.c.l.b16 %v378
        %v511 = vunpack.c.h.b16 %v378
        %v512 = vunpack.c.l.b16 %v379
        %v513 = vunpack.c.h.b16 %v379
        %v514 = vunpack.c.l.b16 %v380
        %v515 = vunpack.c.h.b16 %v380
        %v516 = vunpack.c.l.b16 %v381
        %v517 = vunpack.c.h.b16 %v381
        %v518 = vpack.c.b16 %v482, %v470
        %v519 = vpack.c.b16 %v483, %v471
        %v520 = vpack.c.b16 %v484, %v472
        %v521 = vpack.c.b16 %v485, %v473
        %v522 = vpack.c.b16 %v486, %v474
        %v523 = vpack.c.b16 %v487, %v475
        %v524 = vpack.c.b16 %v488, %v476
        %v525 = vpack.c.b16 %v489, %v477
        %v526 = vpack.c.b16 %v490, %v478
        %v527 = vpack.c.b16 %v491, %v479
        %v528 = vpack.c.b16 %v492, %v480
        %v529 = vpack.c.b16 %v493, %v481
        %v530 = vpack.c.b16 %v506, %v494
        %v531 = vpack.c.b16 %v507, %v495
        %v532 = vpack.c.b16 %v508, %v496
        %v533 = vpack.c.b16 %v509, %v497
        %v534 = vpack.c.b16 %v510, %v498
        %v535 = vpack.c.b16 %v511, %v499
        %v536 = vpack.c.b16 %v512, %v500
        %v537 = vpack.c.b16 %v513, %v501
        %v538 = vpack.c.b16 %v514, %v502
        %v539 = vpack.c.b16 %v515, %v503
        %v540 = vpack.c.b16 %v516, %v504
        %v541 = vpack.c.b16 %v517, %v505
        %v567 = vsel %vm329, %v357, 0
        %569 = vmatprep.subr.bf16.mxu0 0
        %570 = vmatpush1.bf16.msra.mxu0 0
        %571 = vmatprep.subr.bf16.mxu0 0
        %572 = vmatpush1.bf16.msra.mxu0 0
        %573 = vmatprep.subr.bf16.mxu0 0
        %574 = vmatpush1.bf16.msra.mxu0 0
        %575 = vmatprep.subr.bf16.mxu0 0
        %576 = vmatpush1.bf16.msra.mxu0 0
        %577 = vmatprep.subr.bf16.mxu0 0
        %578 = vmatpush1.bf16.msra.mxu0 0
        %579 = vmatprep.subr.bf16.mxu0 0
        %580 = vmatpush1.bf16.msra.mxu0 0
        %581 = vmatprep.subr.bf16.mxu0 %v531
        %582 = vmatpush1.bf16.msra.mxu0 %v530
        %583 = vmatprep.subr.bf16.mxu0 %v519
        %584 = vmatpush1.bf16.msra.mxu0 %v518
        %585 = vmatprep.subr.bf16.mxu0 0
        %586 = vmatpush2.bf16.msra.mxu0 0
        %587 = vmatprep.subr.bf16.mxu0 0
        %588 = vmatpush2.bf16.msra.mxu0 0
        %589 = vmatprep.subr.bf16.mxu0 0
        %590 = vmatpush2.bf16.msra.mxu0 0
        %591 = vmatprep.subr.bf16.mxu0 0
        %592 = vmatpush2.bf16.msra.mxu0 0
        %593 = vmatprep.subr.bf16.mxu0 0
        %594 = vmatpush2.bf16.msra.mxu0 0
        %595 = vmatprep.subr.bf16.mxu0 0
        %596 = vmatpush2.bf16.msra.mxu0 0
        %597 = vmatprep.subr.bf16.mxu0 0
        %598 = vmatpush2.bf16.msra.mxu0 0
        %599 = vmatprep.subr.bf16.mxu0 0
        %600 = vmatpush2.bf16.msra.mxu0 0
        %601 = vmatprep.mubr.bf16.mxu0 0
        %602 = vmatmul.mubr.bf16.gmra.mxu0 %v567
        %v603 = vpop.f32.mrf.mxu0
        %v604 = vadd.f32 %v389, %v603
        %v605 = vpop.f32.mrf.mxu0
        %v606 = vadd.f32 %v393, %v605
        %v607 = vpop.f32.mrf.mxu0
        %v608 = vpop.f32.mrf.mxu0
        %609 = vdwg.mxu0
        %610 = vmatprep.subr.bf16.mxu0 0
        %611 = vmatpush1.bf16.msra.mxu0 0
        %612 = vmatprep.subr.bf16.mxu0 0
        %613 = vmatpush1.bf16.msra.mxu0 0
        %614 = vmatprep.subr.bf16.mxu0 0
        %615 = vmatpush1.bf16.msra.mxu0 0
        %616 = vmatprep.subr.bf16.mxu0 0
        %617 = vmatpush1.bf16.msra.mxu0 0
        %618 = vmatprep.subr.bf16.mxu0 0
        %619 = vmatpush1.bf16.msra.mxu0 0
        %620 = vmatprep.subr.bf16.mxu0 0
        %621 = vmatpush1.bf16.msra.mxu0 0
        %622 = vmatprep.subr.bf16.mxu0 %v533
        %623 = vmatpush1.bf16.msra.mxu0 %v532
        %624 = vmatprep.subr.bf16.mxu0 %v521
        %625 = vmatpush1.bf16.msra.mxu0 %v520
        %626 = vmatprep.subr.bf16.mxu0 0
        %627 = vmatpush2.bf16.msra.mxu0 0
        %628 = vmatprep.subr.bf16.mxu0 0
        %629 = vmatpush2.bf16.msra.mxu0 0
        %630 = vmatprep.subr.bf16.mxu0 0
        %631 = vmatpush2.bf16.msra.mxu0 0
        %632 = vmatprep.subr.bf16.mxu0 0
        %633 = vmatpush2.bf16.msra.mxu0 0
        %634 = vmatprep.subr.bf16.mxu0 0
        %635 = vmatpush2.bf16.msra.mxu0 0
        %636 = vmatprep.subr.bf16.mxu0 0
        %637 = vmatpush2.bf16.msra.mxu0 0
        %638 = vmatprep.subr.bf16.mxu0 0
        %639 = vmatpush2.bf16.msra.mxu0 0
        %640 = vmatprep.subr.bf16.mxu0 0
        %641 = vmatpush2.bf16.msra.mxu0 0
        %642 = vmatprep.mubr.bf16.mxu0 0
        %643 = vmatmul.mubr.bf16.gmra.mxu0 %v567
        %v644 = vpop.f32.mrf.mxu0
        %v645 = vadd.f32 %v397, %v644
        %v646 = vpop.f32.mrf.mxu0
        %v647 = vadd.f32 %v401, %v646
        %v648 = vpop.f32.mrf.mxu0
        %v649 = vpop.f32.mrf.mxu0
        %650 = vdwg.mxu0
        %651 = vmatprep.subr.bf16.mxu0 0
        %652 = vmatpush1.bf16.msra.mxu0 0
        %653 = vmatprep.subr.bf16.mxu0 0
        %654 = vmatpush1.bf16.msra.mxu0 0
        %655 = vmatprep.subr.bf16.mxu0 0
        %656 = vmatpush1.bf16.msra.mxu0 0
        %657 = vmatprep.subr.bf16.mxu0 0
        %658 = vmatpush1.bf16.msra.mxu0 0
        %659 = vmatprep.subr.bf16.mxu0 0
        %660 = vmatpush1.bf16.msra.mxu0 0
        %661 = vmatprep.subr.bf16.mxu0 0
        %662 = vmatpush1.bf16.msra.mxu0 0
        %663 = vmatprep.subr.bf16.mxu0 %v535
        %664 = vmatpush1.bf16.msra.mxu0 %v534
        %665 = vmatprep.subr.bf16.mxu0 %v523
        %666 = vmatpush1.bf16.msra.mxu0 %v522
        %667 = vmatprep.subr.bf16.mxu0 0
        %668 = vmatpush2.bf16.msra.mxu0 0
        %669 = vmatprep.subr.bf16.mxu0 0
        %670 = vmatpush2.bf16.msra.mxu0 0
        %671 = vmatprep.subr.bf16.mxu0 0
        %672 = vmatpush2.bf16.msra.mxu0 0
        %673 = vmatprep.subr.bf16.mxu0 0
        %674 = vmatpush2.bf16.msra.mxu0 0
        %675 = vmatprep.subr.bf16.mxu0 0
        %676 = vmatpush2.bf16.msra.mxu0 0
        %677 = vmatprep.subr.bf16.mxu0 0
        %678 = vmatpush2.bf16.msra.mxu0 0
        %679 = vmatprep.subr.bf16.mxu0 0
        %680 = vmatpush2.bf16.msra.mxu0 0
        %681 = vmatprep.subr.bf16.mxu0 0
        %682 = vmatpush2.bf16.msra.mxu0 0
        %683 = vmatprep.mubr.bf16.mxu0 0
        %684 = vmatmul.mubr.bf16.gmra.mxu0 %v567
        %v685 = vpop.f32.mrf.mxu0
        %v686 = vadd.f32 %v405, %v685
        %v687 = vpop.f32.mrf.mxu0
        %v688 = vadd.f32 %v409, %v687
        %v689 = vpop.f32.mrf.mxu0
        %v690 = vpop.f32.mrf.mxu0
        %691 = vdwg.mxu0
        %692 = vmatprep.subr.bf16.mxu0 0
        %693 = vmatpush1.bf16.msra.mxu0 0
        %694 = vmatprep.subr.bf16.mxu0 0
        %695 = vmatpush1.bf16.msra.mxu0 0
        %696 = vmatprep.subr.bf16.mxu0 0
        %697 = vmatpush1.bf16.msra.mxu0 0
        %698 = vmatprep.subr.bf16.mxu0 0
        %699 = vmatpush1.bf16.msra.mxu0 0
        %700 = vmatprep.subr.bf16.mxu0 0
        %701 = vmatpush1.bf16.msra.mxu0 0
        %702 = vmatprep.subr.bf16.mxu0 0
        %703 = vmatpush1.bf16.msra.mxu0 0
        %704 = vmatprep.subr.bf16.mxu0 %v537
        %705 = vmatpush1.bf16.msra.mxu0 %v536
        %706 = vmatprep.subr.bf16.mxu0 %v525
        %707 = vmatpush1.bf16.msra.mxu0 %v524
        %708 = vmatprep.subr.bf16.mxu0 0
        %709 = vmatpush2.bf16.msra.mxu0 0
        %710 = vmatprep.subr.bf16.mxu0 0
        %711 = vmatpush2.bf16.msra.mxu0 0
        %712 = vmatprep.subr.bf16.mxu0 0
        %713 = vmatpush2.bf16.msra.mxu0 0
        %714 = vmatprep.subr.bf16.mxu0 0
        %715 = vmatpush2.bf16.msra.mxu0 0
        %716 = vmatprep.subr.bf16.mxu0 0
        %717 = vmatpush2.bf16.msra.mxu0 0
        %718 = vmatprep.subr.bf16.mxu0 0
        %719 = vmatpush2.bf16.msra.mxu0 0
        %720 = vmatprep.subr.bf16.mxu0 0
        %721 = vmatpush2.bf16.msra.mxu0 0
        %722 = vmatprep.subr.bf16.mxu0 0
        %723 = vmatpush2.bf16.msra.mxu0 0
        %724 = vmatprep.mubr.bf16.mxu0 0
        %725 = vmatmul.mubr.bf16.gmra.mxu0 %v567
        %v726 = vpop.f32.mrf.mxu0
        %v727 = vadd.f32 %v413, %v726
        %v728 = vpop.f32.mrf.mxu0
        %v729 = vadd.f32 %v417, %v728
        %v730 = vpop.f32.mrf.mxu0
        %v731 = vpop.f32.mrf.mxu0
        %732 = vdwg.mxu0
        %733 = vmatprep.subr.bf16.mxu0 0
        %734 = vmatpush1.bf16.msra.mxu0 0
        %735 = vmatprep.subr.bf16.mxu0 0
        %736 = vmatpush1.bf16.msra.mxu0 0
        %737 = vmatprep.subr.bf16.mxu0 0
        %738 = vmatpush1.bf16.msra.mxu0 0
        %739 = vmatprep.subr.bf16.mxu0 0
        %740 = vmatpush1.bf16.msra.mxu0 0
        %741 = vmatprep.subr.bf16.mxu0 0
        %742 = vmatpush1.bf16.msra.mxu0 0
        %743 = vmatprep.subr.bf16.mxu0 0
        %744 = vmatpush1.bf16.msra.mxu0 0
        %745 = vmatprep.subr.bf16.mxu0 %v539
        %746 = vmatpush1.bf16.msra.mxu0 %v538
        %747 = vmatprep.subr.bf16.mxu0 %v527
        %748 = vmatpush1.bf16.msra.mxu0 %v526
        %749 = vmatprep.subr.bf16.mxu0 0
        %750 = vmatpush2.bf16.msra.mxu0 0
        %751 = vmatprep.subr.bf16.mxu0 0
        %752 = vmatpush2.bf16.msra.mxu0 0
        %753 = vmatprep.subr.bf16.mxu0 0
        %754 = vmatpush2.bf16.msra.mxu0 0
        %755 = vmatprep.subr.bf16.mxu0 0
        %756 = vmatpush2.bf16.msra.mxu0 0
        %757 = vmatprep.subr.bf16.mxu0 0
        %758 = vmatpush2.bf16.msra.mxu0 0
        %759 = vmatprep.subr.bf16.mxu0 0
        %760 = vmatpush2.bf16.msra.mxu0 0
        %761 = vmatprep.subr.bf16.mxu0 0
        %762 = vmatpush2.bf16.msra.mxu0 0
        %763 = vmatprep.subr.bf16.mxu0 0
        %764 = vmatpush2.bf16.msra.mxu0 0
        %765 = vmatprep.mubr.bf16.mxu0 0
        %766 = vmatmul.mubr.bf16.gmra.mxu0 %v567
        %v767 = vpop.f32.mrf.mxu0
        %v768 = vadd.f32 %v421, %v767
        %v769 = vpop.f32.mrf.mxu0
        %v770 = vadd.f32 %v425, %v769
        %v771 = vpop.f32.mrf.mxu0
        %v772 = vpop.f32.mrf.mxu0
        %773 = vdwg.mxu0
        %774 = vmatprep.subr.bf16.mxu0 0
        %775 = vmatpush1.bf16.msra.mxu0 0
        %776 = vmatprep.subr.bf16.mxu0 0
        %777 = vmatpush1.bf16.msra.mxu0 0
        %778 = vmatprep.subr.bf16.mxu0 0
        %779 = vmatpush1.bf16.msra.mxu0 0
        %780 = vmatprep.subr.bf16.mxu0 0
        %781 = vmatpush1.bf16.msra.mxu0 0
        %782 = vmatprep.subr.bf16.mxu0 0
        %783 = vmatpush1.bf16.msra.mxu0 0
        %784 = vmatprep.subr.bf16.mxu0 0
        %785 = vmatpush1.bf16.msra.mxu0 0
        %786 = vmatprep.subr.bf16.mxu0 %v541
        %787 = vmatpush1.bf16.msra.mxu0 %v540
        %788 = vmatprep.subr.bf16.mxu0 %v529
        %789 = vmatpush1.bf16.msra.mxu0 %v528
        %790 = vmatprep.subr.bf16.mxu0 0
        %791 = vmatpush2.bf16.msra.mxu0 0
        %792 = vmatprep.subr.bf16.mxu0 0
        %793 = vmatpush2.bf16.msra.mxu0 0
        %794 = vmatprep.subr.bf16.mxu0 0
        %795 = vmatpush2.bf16.msra.mxu0 0
        %796 = vmatprep.subr.bf16.mxu0 0
        %797 = vmatpush2.bf16.msra.mxu0 0
        %798 = vmatprep.subr.bf16.mxu0 0
        %799 = vmatpush2.bf16.msra.mxu0 0
        %800 = vmatprep.subr.bf16.mxu0 0
        %801 = vmatpush2.bf16.msra.mxu0 0
        %802 = vmatprep.subr.bf16.mxu0 0
        %803 = vmatpush2.bf16.msra.mxu0 0
        %804 = vmatprep.subr.bf16.mxu0 0
        %805 = vmatpush2.bf16.msra.mxu0 0
        %806 = vmatprep.mubr.bf16.mxu0 0
        %807 = vmatmul.mubr.bf16.gmra.mxu0 %v567
        %v808 = vpop.f32.mrf.mxu0
        %v809 = vadd.f32 %v429, %v808
        %v810 = vpop.f32.mrf.mxu0
        %v811 = vadd.f32 %v433, %v810
        %v812 = vpop.f32.mrf.mxu0
        %v813 = vpop.f32.mrf.mxu0
        %814 = vdwg.mxu0
        %v815 = vpack.c.bf16 %v604, %v604
        %v816 = vpack.c.bf16 %v606, %v606
        %v817 = vpack.c.bf16 %v645, %v645
        %v818 = vpack.c.bf16 %v647, %v647
        %v819 = vpack.c.bf16 %v686, %v686
        %v820 = vpack.c.bf16 %v688, %v688
        %v821 = vpack.c.bf16 %v727, %v727
        %v822 = vpack.c.bf16 %v729, %v729
        %v823 = vpack.c.bf16 %v768, %v768
        %v824 = vpack.c.bf16 %v770, %v770
        %v825 = vpack.c.bf16 %v809, %v809
        %v826 = vpack.c.bf16 %v811, %v811
        %827 = vst [vmem:[%s300] sm:$0xf] %v815
        %828 = vst [vmem:[%s307] sm:$0xf] %v819
        %829 = vst [vmem:[%s314] sm:$0xf] %v823
        %s830 = scalar_lea.vmem %s300, 4 [#allocation5]
        %831 = vst [vmem:[%s830] sm:$0xf] %v816
        %s832 = scalar_lea.vmem %s307, 4 [#allocation6]
        %833 = vst [vmem:[%s832] sm:$0xf] %v820
        %s834 = scalar_lea.vmem %s314, 4 [#allocation8]
        %835 = vst [vmem:[%s834] sm:$0xf] %v824
        %s836 = scalar_lea.vmem %s300, 8 [#allocation5]
        %837 = vst [vmem:[%s836] sm:$0xf] %v817
        %s838 = scalar_lea.vmem %s307, 8 [#allocation6]
        %839 = vst [vmem:[%s838] sm:$0xf] %v821
        %s840 = scalar_lea.vmem %s314, 8 [#allocation8]
        %841 = vst [vmem:[%s840] sm:$0xf] %v825
        %s842 = scalar_lea.vmem %s300, 12 [#allocation5]
        %843 = vst [vmem:[%s842] sm:$0xf] %v818
        %s844 = scalar_lea.vmem %s307, 12 [#allocation6]
        %845 = vst [vmem:[%s844] sm:$0xf] %v822
        %s846 = scalar_lea.vmem %s314, 12 [#allocation8]
        %847 = vst [vmem:[%s846] sm:$0xf] %v826
        %s848 = sand.u32 %s143, 1
        %s849 = scalar_lea.sflag [#allocation4], %s848
        %s850 = sand.u32 %s143, 1
        %s851 = smul.addr %s850, 16
        %s852 = scalar_lea.vmem [#allocation5], %s851
        %s853 = sand.u32 %s25, 1
        %s854 = scalar_lea.sflag [#allocation7], %s853
        %s855 = sand.u32 %s171, 1
        %s856 = smul.addr %s855, 16
        %s857 = scalar_lea.vmem [#allocation6], %s856
        %s858 = sand.u32 %s25, 1
        %s859 = scalar_lea.sflag [#allocation7], %s858
        %s860 = sand.u32 %s199, 1
        %s861 = smul.addr %s860, 16
        %s862 = scalar_lea.vmem [#allocation8], %s861
        // Predicated region
        $region41: #{tpu_custom_call.1} parent=35 // pred_check
          %p863 = pneg %p153
        $region42: #{tpu_custom_call.1} parent=35 // pred_check_branch
          %865 = sbr.rel (%p863) target = $region44
        $region43: #{tpu_custom_call.1} parent=35 // pred_region
          %s867 = ssub.s32 256, 256
          %868 = vsyncadd %s849, %s867
          %s869 = smul.addr %s29, 4
          %s870 = sadd.s32 %s30, %s869
          %s871 = smul.addr %s870, 64
          %s872 = scalar_lea.hbm %s4, %s871
          %s873 = sshll.u32 %s852, 4
          %s874 = int_to_ptr.vmem [resolvable:$true] %s873
          %879 = dma.vmem_to_hbm [thread:$0]  %s874, 256, %s872, %s849, 64, 64, 4
        $region44: #{tpu_custom_call.1} parent=35 // pred_fallthru
          _
        // Predicated region
        $region45: #{tpu_custom_call.1} parent=35 // pred_check
          %p880 = pneg %p181
        $region46: #{tpu_custom_call.1} parent=35 // pred_check_branch
          %882 = sbr.rel (%p880) target = $region48
        $region47: #{tpu_custom_call.1} parent=35 // pred_region
          %s884 = ssub.s32 256, 256
          %885 = vsyncadd %s854, %s884
          %s886 = smul.addr %s29, 4
          %s887 = sadd.s32 %s30, %s886
          %s888 = smul.addr %s887, 64
          %s889 = scalar_lea.hbm %s5, %s888
          %s890 = sshll.u32 %s857, 4
          %s891 = int_to_ptr.vmem [resolvable:$true] %s890
          %896 = dma.vmem_to_hbm [thread:$0]  %s891, 256, %s889, %s854, 64, 64, 4
        $region48: #{tpu_custom_call.1} parent=35 // pred_fallthru
          _
        // Predicated region
        $region49: #{tpu_custom_call.1} parent=35 // pred_check
          %p897 = pneg %p209
        $region50: #{tpu_custom_call.1} parent=35 // pred_check_branch
          %899 = sbr.rel (%p897) target = $region52
        $region51: #{tpu_custom_call.1} parent=35 // pred_region
          %s901 = ssub.s32 256, 256
          %902 = vsyncadd %s859, %s901
          %s903 = smul.addr %s29, 4
          %s904 = sadd.s32 %s30, %s903
          %s905 = smul.addr %s904, 64
          %s906 = scalar_lea.hbm %s6, %s905
          %s907 = sshll.u32 %s862, 4
          %s908 = int_to_ptr.vmem [resolvable:$true] %s907
          %913 = dma.vmem_to_hbm [thread:$0]  %s908, 256, %s906, %s859, 64, 64, 4
        $region52: #{tpu_custom_call.1} parent=35 // pred_fallthru
          _
      $region36: #{tpu_custom_call.1} parent=5 // pred_fallthru
        _
      %p914 = scmp.le.s32.totalorder 2, %s20
      // Predicated region
      $region53: #{tpu_custom_call.1} parent=5 // pred_check
        %p915 = pneg %p914
      $region54: #{tpu_custom_call.1} parent=5 // pred_check_branch
        %917 = sbr.rel (%p915) target = $region56
      $region55: #{tpu_custom_call.1} parent=5 // pred_region
        %s918 = ssub.s32 %s20, 2
        // Predicated region
        $region57: #{tpu_custom_call.1} parent=55 // pred_check
          %p919 = pneg %p159
        $region58: #{tpu_custom_call.1} parent=55 // pred_check_branch
          %921 = sbr.rel (%p919) target = $region60
        $region59: #{tpu_custom_call.1} parent=55 // pred_region
          %s922 = sand.u32 %s144, 1
          %s923 = scalar_lea.sflag [#allocation4], %s922
          %s924 = sand.u32 %s144, 1
          %s925 = smul.addr %s924, 16
          %s926 = scalar_lea.vmem [#allocation5], %s925
          %927 = dma.done %s923, 256
        $region60: #{tpu_custom_call.1} parent=55 // pred_fallthru
          _
        // Predicated region
        $region61: #{tpu_custom_call.1} parent=55 // pred_check
          %p928 = pneg %p187
        $region62: #{tpu_custom_call.1} parent=55 // pred_check_branch
          %930 = sbr.rel (%p928) target = $region64
        $region63: #{tpu_custom_call.1} parent=55 // pred_region
          %s931 = sand.u32 %s26, 1
          %s932 = scalar_lea.sflag [#allocation7], %s931
          %s933 = sand.u32 %s172, 1
          %s934 = smul.addr %s933, 16
          %s935 = scalar_lea.vmem [#allocation6], %s934
          %936 = dma.done %s932, 256
        $region64: #{tpu_custom_call.1} parent=55 // pred_fallthru
          _
        // Predicated region
        $region65: #{tpu_custom_call.1} parent=55 // pred_check
          %p937 = pneg %p215
        $region66: #{tpu_custom_call.1} parent=55 // pred_check_branch
          %939 = sbr.rel (%p937) target = $region68
        $region67: #{tpu_custom_call.1} parent=55 // pred_region
          %s940 = sand.u32 %s26, 1
          %s941 = scalar_lea.sflag [#allocation7], %s940
          %s942 = sand.u32 %s200, 1
          %s943 = smul.addr %s942, 16
          %s944 = scalar_lea.vmem [#allocation8], %s943
          %945 = dma.done %s941, 256
        $region68: #{tpu_custom_call.1} parent=55 // pred_fallthru
          _
      $region56: #{tpu_custom_call.1} parent=5 // pred_fallthru
        _
    $region6: #{tpu_custom_call.1} parent=1 // loop_footer
      %s24 = sadd.s32 1, %s20
    $region7: #{tpu_custom_call.1} parent=1 // loop_footer_branch
      %19 = sbr.rel target = $region3
    $region8: #{tpu_custom_call.1} parent=1 // loop_exit
      _
    %946 = vsyncpa [#allocation3], 1
    %s947 = scalar_lea.sflag [#allocation3], 1
    %948 = vsyncpa %s947, 1
    %949 = vsyncpa [#allocation4], 1
    %s950 = scalar_lea.sflag [#allocation4], 1
    %951 = vsyncpa %s950, 1
    %952 = vsyncpa [#allocation7], 1
    %s953 = scalar_lea.sflag [#allocation7], 1
    %954 = vsyncpa %s953, 1

// kernel: tpu_custom_call.1
$region0: #{tpu_custom_call.1}
  #allocation0 [shape = 'u32[]', space=smem, size = 0x4, offset = 0x4, fixed_abs, tag = 'smem constant byte address 0x4 - core index']
  #allocation1 [shape = 'u32[144,128]{1,0:T(1,128)}', space=vmem, size = 0x12000, scoped, tag = 'internal scratch']
  %s0 = inlined_call_operand.vmem [shape: f32[2,8,32], index: 0, kind: input, shape index: {}]
  %s1 = inlined_call_operand.vmem [shape: f32[2,6,32], index: 1, kind: input, shape index: {}]
  %s2 = inlined_call_operand.hbm [shape: bf16[32,1536], index: 2, kind: input, shape index: {}]
  %s3 = inlined_call_operand.vmem [shape: f32[1,1536], index: 3, kind: input, shape index: {}]
  %s4 = inlined_call_operand.hbm [shape: bf16[2,4,8,128], index: 4, kind: output, shape index: {0}]
  %s5 = inlined_call_operand.hbm [shape: bf16[2,4,8,128], index: 5, kind: output, shape index: {1}]
  %s6 = inlined_call_operand.hbm [shape: bf16[2,4,8,128], index: 6, kind: output, shape index: {2}]
  %7 = xla_tuple %s4, %s5, %s6
  %s8 = sld [smem:[#allocation0]]
  $region69: #{tpu_custom_call.1} parent=0
    _
  %s10 = ssub.s32 1, %s8
  %s11 = scalar_select 0, %s10, %s8
  $region1: #{tpu_custom_call.1} parent=0
    #allocation2 [shape = 'u8[98304]{0}', space=vmem, size = 0x18000, scoped, tag = 'input window, operand 2, single buffered']
    #allocation3 [shape = 's32[2]{0}', space=sflag, size = 0x8, scoped, tag = 'scoped memory for tpu_custom_call.1']
    #allocation4 [shape = 's32[2]{0}', space=sflag, size = 0x8, scoped, tag = 'scoped memory for tpu_custom_call.1']
    #allocation5 [shape = 'u8[16384]{0}', space=vmem, size = 0x4000, scoped, tag = 'output window, operand 0']
    #allocation6 [shape = 'u8[16384]{0}', space=vmem, size = 0x4000, scoped, tag = 'output window, operand 1']
    #allocation7 [shape = 's32[2]{0}', space=sflag, size = 0x8, scoped, tag = 'scoped memory for tpu_custom_call.1']
    #allocation8 [shape = 'u8[16384]{0}', space=vmem, size = 0x4000, scoped, tag = 'output window, operand 2']
    %12 = vsyncpa [#allocation3], 0
    %13 = vsyncpa [#allocation4], 0
    %s14 = scalar_lea.sflag [#allocation4], 1
    %15 = vsyncpa %s14, 0
    %16 = vsyncpa [#allocation7], 0
    %s17 = scalar_lea.sflag [#allocation7], 1
    %18 = vsyncpa %s17, 0
    loop: start=0, step=1, limit=4
    $region2: #{tpu_custom_call.1} parent=1 // loop_pre_header
      _
    $region3: #{tpu_custom_call.1} parent=1 // loop_header
      %s20 = sphi 0, %s24
      %p21 = scmp.ge.s32.totalorder %s20, 4
      %s27 = sphi 0, %s39
      %s28 = sphi 0, %s35
      %s29 = sphi 0, %s27
      %s30 = sphi 0, %s28
      %s31 = sphi 0, %s29
      %s32 = sphi 0, %s30
      %s44 = sphi 0, %s46
      %s47 = sphi 0, %s44
      %s48 = sphi 0, %s47
      %s64 = sphi 0, %s48
      %s70 = sphi 0, %s72
      %s73 = sphi 0, %s70
      %s74 = sphi 0, %s73
      %s90 = sphi 0, %s74
      %s94 = sphi 0, %s94
      %s96 = sphi 0, %s94
      %s97 = sphi 0, %s96
      %s111 = sphi 0, %s97
      %s115 = sphi 0, %s115
      %s117 = sphi 0, %s115
      %s118 = sphi 0, %s117
      %s132 = sphi 0, %s118
      %s140 = sphi 0, %s142
      %s143 = sphi 0, %s140
      %s144 = sphi 0, %s143
      %s160 = sphi 0, %s144
      %s168 = sphi 0, %s170
      %s171 = sphi 0, %s168
      %s172 = sphi 0, %s171
      %s188 = sphi 0, %s172
      %s196 = sphi 0, %s198
      %s199 = sphi 0, %s196
      %s200 = sphi 0, %s199
      %s216 = sphi 0, %s200
    $region4: #{tpu_custom_call.1} parent=1 // loop_header_branch
      %23 = sbr.rel (%p21) target = $region8
    $region5: #{tpu_custom_call.1} parent=1 // loop_body
      %s25 = ssub.s32 %s20, 1
      %s26 = ssub.s32 %s20, 2
      %s33 = sadd.s32 1, %s28
      %p34 = scmp.ge.s32.totalorder %s33, 1
      %s35 = scalar_select %p34, 0, %s33
      %s36 = sadd.s32 1, %s27
      %s37 = scalar_select %p34, %s36, %s27
      %p38 = scmp.ge.s32.totalorder %s37, 2
      %s39 = scalar_select %p38, 0, %s37
      %s40 = ssub.s32 %s27, %s39
      %s41 = ssub.s32 %s28, %s35
      %s42 = sor.u32 %s40, %s41
      %p43 = scmp.eq.s32.totalorder %s42, 0
      %s45 = sadd.s32 %s44, 1
      %s46 = scalar_select %p43, %s44, %s45
      %p49 = pneg %p43
      %p50 = scmp.eq.s32.totalorder %s20, 1
      %p51 = por %p49, %p50
      %p52 = scmp.ne.s32.totalorder %s44, %s47
      %p53 = scmp.eq.s32.totalorder %s20, 0
      %p54 = por %p52, %p53
      %p55 = scmp.ne.s32.totalorder %s44, %s47
      %p56 = scmp.eq.s32.totalorder %s25, 1
      %p57 = por %p55, %p56
      %p58 = scmp.ne.s32.totalorder %s47, %s48
      %p59 = scmp.eq.s32.totalorder %s25, 0
      %p60 = por %p58, %p59
      %p61 = scmp.ne.s32.totalorder %s47, %s48
      %p62 = scmp.eq.s32.totalorder %s26, 1
      %p63 = por %p61, %p62
      %p65 = scmp.ne.s32.totalorder %s48, %s64
      %p66 = scmp.eq.s32.totalorder %s26, 0
      %p67 = por %p65, %p66
      %s68 = ssub.s32 %s27, %s39
      %p69 = scmp.eq.s32.totalorder %s68, 0
      %s71 = sadd.s32 %s70, 1
      %s72 = scalar_select %p69, %s70, %s71
      %p75 = pneg %p69
      %p76 = scmp.eq.s32.totalorder %s20, 1
      %p77 = por %p75, %p76
      %p78 = scmp.ne.s32.totalorder %s70, %s73
      %p79 = scmp.eq.s32.totalorder %s20, 0
      %p80 = por %p78, %p79
      %p81 = scmp.ne.s32.totalorder %s70, %s73
      %p82 = scmp.eq.s32.totalorder %s25, 1
      %p83 = por %p81, %p82
      %p84 = scmp.ne.s32.totalorder %s73, %s74
      %p85 = scmp.eq.s32.totalorder %s25, 0
      %p86 = por %p84, %p85
      %p87 = scmp.ne.s32.totalorder %s73, %s74
      %p88 = scmp.eq.s32.totalorder %s26, 1
      %p89 = por %p87, %p88
      %p91 = scmp.ne.s32.totalorder %s74, %s90
      %p92 = scmp.eq.s32.totalorder %s26, 0
      %p93 = por %p91, %p92
      %s95 = sadd.s32 %s94, 1
      %p98 = scmp.eq.s32.totalorder %s20, 1
      %p99 = scmp.ne.s32.totalorder %s94, %s96
      %p100 = scmp.eq.s32.totalorder %s20, 0
      %p101 = por %p99, %p100
      %p102 = scmp.ne.s32.totalorder %s94, %s96
      %p103 = scmp.eq.s32.totalorder %s25, 1
      %p104 = por %p102, %p103
      %p105 = scmp.ne.s32.totalorder %s96, %s97
      %p106 = scmp.eq.s32.totalorder %s25, 0
      %p107 = por %p105, %p106
      %p108 = scmp.ne.s32.totalorder %s96, %s97
      %p109 = scmp.eq.s32.totalorder %s26, 1
      %p110 = por %p108, %p109
      %p112 = scmp.ne.s32.totalorder %s97, %s111
      %p113 = scmp.eq.s32.totalorder %s26, 0
      %p114 = por %p112, %p113
      %s116 = sadd.s32 %s115, 1
      %p119 = scmp.eq.s32.totalorder %s20, 1
      %p120 = scmp.ne.s32.totalorder %s115, %s117
      %p121 = scmp.eq.s32.totalorder %s20, 0
      %p122 = por %p120, %p121
      %p123 = scmp.ne.s32.totalorder %s115, %s117
      %p124 = scmp.eq.s32.totalorder %s25, 1
      %p125 = por %p123, %p124
      %p126 = scmp.ne.s32.totalorder %s117, %s118
      %p127 = scmp.eq.s32.totalorder %s25, 0
      %p128 = por %p126, %p127
      %p129 = scmp.ne.s32.totalorder %s117, %s118
      %p130 = scmp.eq.s32.totalorder %s26, 1
      %p131 = por %p129, %p130
      %p133 = scmp.ne.s32.totalorder %s118, %s132
      %p134 = scmp.eq.s32.totalorder %s26, 0
      %p135 = por %p133, %p134
      %s136 = ssub.s32 %s27, %s39
      %s137 = ssub.s32 %s28, %s35
      %s138 = sor.u32 %s136, %s137
      %p139 = scmp.eq.s32.totalorder %s138, 0
      %s141 = sadd.s32 %s140, 1
      %s142 = scalar_select %p139, %s140, %s141
      %p145 = pneg %p139
      %p146 = scmp.eq.s32.totalorder %s20, 1
      %p147 = por %p145, %p146
      %p148 = scmp.ne.s32.totalorder %s140, %s143
      %p149 = scmp.eq.s32.totalorder %s20, 0
      %p150 = por %p148, %p149
      %p151 = scmp.ne.s32.totalorder %s140, %s143
      %p152 = scmp.eq.s32.totalorder %s25, 1
      %p153 = por %p151, %p152
      %p154 = scmp.ne.s32.totalorder %s143, %s144
      %p155 = scmp.eq.s32.totalorder %s25, 0
      %p156 = por %p154, %p155
      %p157 = scmp.ne.s32.totalorder %s143, %s144
      %p158 = scmp.eq.s32.totalorder %s26, 1
      %p159 = por %p157, %p158
      %p161 = scmp.ne.s32.totalorder %s144, %s160
      %p162 = scmp.eq.s32.totalorder %s26, 0
      %p163 = por %p161, %p162
      %s164 = ssub.s32 %s27, %s39
      %s165 = ssub.s32 %s28, %s35
      %s166 = sor.u32 %s164, %s165
      %p167 = scmp.eq.s32.totalorder %s166, 0
      %s169 = sadd.s32 %s168, 1
      %s170 = scalar_select %p167, %s168, %s169
      %p173 = pneg %p167
      %p174 = scmp.eq.s32.totalorder %s20, 1
      %p175 = por %p173, %p174
      %p176 = scmp.ne.s32.totalorder %s168, %s171
      %p177 = scmp.eq.s32.totalorder %s20, 0
      %p178 = por %p176, %p177
      %p179 = scmp.ne.s32.totalorder %s168, %s171
      %p180 = scmp.eq.s32.totalorder %s25, 1
      %p181 = por %p179, %p180
      %p182 = scmp.ne.s32.totalorder %s171, %s172
      %p183 = scmp.eq.s32.totalorder %s25, 0
      %p184 = por %p182, %p183
      %p185 = scmp.ne.s32.totalorder %s171, %s172
      %p186 = scmp.eq.s32.totalorder %s26, 1
      %p187 = por %p185, %p186
      %p189 = scmp.ne.s32.totalorder %s172, %s188
      %p190 = scmp.eq.s32.totalorder %s26, 0
      %p191 = por %p189, %p190
      %s192 = ssub.s32 %s27, %s39
      %s193 = ssub.s32 %s28, %s35
      %s194 = sor.u32 %s192, %s193
      %p195 = scmp.eq.s32.totalorder %s194, 0
      %s197 = sadd.s32 %s196, 1
      %s198 = scalar_select %p195, %s196, %s197
      %p201 = pneg %p195
      %p202 = scmp.eq.s32.totalorder %s20, 1
      %p203 = por %p201, %p202
      %p204 = scmp.ne.s32.totalorder %s196, %s199
      %p205 = scmp.eq.s32.totalorder %s20, 0
      %p206 = por %p204, %p205
      %p207 = scmp.ne.s32.totalorder %s196, %s199
      %p208 = scmp.eq.s32.totalorder %s25, 1
      %p209 = por %p207, %p208
      %p210 = scmp.ne.s32.totalorder %s199, %s200
      %p211 = scmp.eq.s32.totalorder %s25, 0
      %p212 = por %p210, %p211
      %p213 = scmp.ne.s32.totalorder %s199, %s200
      %p214 = scmp.eq.s32.totalorder %s26, 1
      %p215 = por %p213, %p214
      %p217 = scmp.ne.s32.totalorder %s200, %s216
      %p218 = scmp.eq.s32.totalorder %s26, 0
      %p219 = por %p217, %p218
      %p220 = scmp.le.s32.totalorder 1, %s20
      %p221 = scmp.lt.s32.totalorder %s20, 3
      %p222 = pnand %p220, %p221
      %p223 = pneg %p222
      // Predicated region
      $region9: #{tpu_custom_call.1} parent=5 // pred_check
        _
      $region10: #{tpu_custom_call.1} parent=5 // pred_check_branch
        %225 = sbr.rel (%p222) target = $region12
      $region11: #{tpu_custom_call.1} parent=5 // pred_region
        %s226 = ssub.s32 %s20, 1
        // Predicated region
        $region13: #{tpu_custom_call.1} parent=11 // pred_check
          %p227 = pneg %p107
        $region14: #{tpu_custom_call.1} parent=11 // pred_check_branch
          %229 = sbr.rel (%p227) target = $region16
        $region15: #{tpu_custom_call.1} parent=11 // pred_region
          %s231 = ssub.s32 3072, 3072
          %232 = vsyncadd [#allocation3], %s231
          %s233 = sshll.u32 [#allocation2], 4
          %s234 = int_to_ptr.vmem [resolvable:$true] %s233
          %239 = dma.hbm_to_vmem [thread:$0]  %s2, 3072, %s234, [#allocation3], 768, 768, 48
        $region16: #{tpu_custom_call.1} parent=11 // pred_fallthru
          _
        // Predicated region
        $region17: #{tpu_custom_call.1} parent=11 // pred_check
          %p240 = pneg %p128
        $region18: #{tpu_custom_call.1} parent=11 // pred_check_branch
          %242 = sbr.rel (%p240) target = $region20
        $region19: #{tpu_custom_call.1} parent=11 // pred_region
          _
        $region20: #{tpu_custom_call.1} parent=11 // pred_fallthru
          _
      $region12: #{tpu_custom_call.1} parent=5 // pred_fallthru
        _
      %p243 = scmp.lt.s32.totalorder %s20, 2
      // Predicated region
      $region21: #{tpu_custom_call.1} parent=5 // pred_check
        %p244 = pneg %p243
      $region22: #{tpu_custom_call.1} parent=5 // pred_check_branch
        %246 = sbr.rel (%p244) target = $region24
      $region23: #{tpu_custom_call.1} parent=5 // pred_region
        // Predicated region
        $region25: #{tpu_custom_call.1} parent=23 // pred_check
          %p247 = pneg %p54
        $region26: #{tpu_custom_call.1} parent=23 // pred_check_branch
          %249 = sbr.rel (%p247) target = $region28
        $region27: #{tpu_custom_call.1} parent=23 // pred_region
          %p250 = scmp.lt.s32.totalorder %s27, 1
          %s251 = scalar_select %p250, %s27, 1
          %p252 = scmp.lt.s32.totalorder %s28, 0
          %s253 = scalar_select %p252, %s28, 0
          %s254 = sadd.s32 %s253, %s251
          %s255 = smul.addr %s254, 8
          %s256 = scalar_lea.vmem %s0, %s255
        $region28: #{tpu_custom_call.1} parent=23 // pred_fallthru
          _
        // Predicated region
        $region29: #{tpu_custom_call.1} parent=23 // pred_check
          %p257 = pneg %p80
        $region30: #{tpu_custom_call.1} parent=23 // pred_check_branch
          %259 = sbr.rel (%p257) target = $region32
        $region31: #{tpu_custom_call.1} parent=23 // pred_region
          %p260 = scmp.lt.s32.totalorder %s27, 1
          %s261 = scalar_select %p260, %s27, 1
          %s262 = smul.addr %s261, 8
          %s263 = scalar_lea.vmem %s1, %s262
        $region32: #{tpu_custom_call.1} parent=23 // pred_fallthru
          _
      $region24: #{tpu_custom_call.1} parent=5 // pred_fallthru
        _
      %p264 = scmp.le.s32.totalorder 1, %s20
      %p265 = scmp.lt.s32.totalorder %s20, 3
      %p266 = pnand %p264, %p265
      %p267 = pneg %p266
      // Predicated region
      $region33: #{tpu_custom_call.1} parent=5 // pred_check
        _
      $region34: #{tpu_custom_call.1} parent=5 // pred_check_branch
        %269 = sbr.rel (%p266) target = $region36
      $region35: #{tpu_custom_call.1} parent=5 // pred_region
        %s270 = ssub.s32 %s20, 1
        // Predicated region
        $region37: #{tpu_custom_call.1} parent=35 // pred_check
          %p271 = pneg %p107
        $region38: #{tpu_custom_call.1} parent=35 // pred_check_branch
          %273 = sbr.rel (%p271) target = $region40
        $region39: #{tpu_custom_call.1} parent=35 // pred_region
          %274 = dma.done [#allocation3], 3072
        $region40: #{tpu_custom_call.1} parent=35 // pred_fallthru
          _
        %p275 = scmp.lt.s32.totalorder %s29, 1
        %s276 = scalar_select %p275, %s29, 1
        %p277 = scmp.lt.s32.totalorder %s30, 0
        %s278 = scalar_select %p277, %s30, 0
        %s279 = sadd.s32 %s278, %s276
        %s280 = smul.addr %s279, 8
        %s281 = scalar_lea.vmem %s0, %s280
        %p282 = pneg %p60
        %p283 = pneg %p57
        %p284 = scmp.lt.s32.totalorder %s29, 1
        %s285 = scalar_select %p284, %s29, 1
        %s286 = smul.addr %s285, 8
        %s287 = scalar_lea.vmem %s1, %s286
        %p288 = pneg %p86
        %p289 = pneg %p83
        %p290 = pneg %p107
        %p291 = pneg %p104
        %p292 = pneg %p128
        %p293 = pneg %p125
        %p294 = pneg %p156
        %p295 = pneg %p153
        %s296 = sand.u32 %s143, 1
        %s297 = scalar_lea.sflag [#allocation4], %s296
        %s298 = sand.u32 %s143, 1
        %s299 = smul.addr %s298, 16
        %s300 = scalar_lea.vmem [#allocation5], %s299
        %p301 = pneg %p184
        %p302 = pneg %p181
        %s303 = sand.u32 %s25, 1
        %s304 = scalar_lea.sflag [#allocation7], %s303
        %s305 = sand.u32 %s171, 1
        %s306 = smul.addr %s305, 16
        %s307 = scalar_lea.vmem [#allocation6], %s306
        %p308 = pneg %p212
        %p309 = pneg %p209
        %s310 = sand.u32 %s25, 1
        %s311 = scalar_lea.sflag [#allocation7], %s310
        %s312 = sand.u32 %s199, 1
        %s313 = smul.addr %s312, 16
        %s314 = scalar_lea.vmem [#allocation8], %s313
        %p315 = scmp.lt.s32.totalorder %s29, 1
        %s316 = scalar_select %p315, %s29, 1
        %p317 = scmp.lt.s32.totalorder %s30, 0
        %s318 = scalar_select %p317, %s30, 0
        %s319 = sadd.s32 %s318, %s316
        %s320 = smul.addr %s319, 8
        %s321 = scalar_lea.vmem %s0, %s320
        %p322 = scmp.lt.s32.totalorder %s29, 1
        %s323 = scalar_select %p322, %s29, 1
        %s324 = smul.addr %s323, 8
        %s325 = scalar_lea.vmem %s1, %s324
        %v327 = vld [vmem:[%s321] sm:$0xff]
        %v328 = vld [vmem:[%s325] sm:$0x3f]
        %vm329 = vcmask 261120
        %v330 = vsel %vm329, %v327, 0.0
        %331 = vadd.xlane.f32.xlu0 %v330
        %v332 = vpop.xlane.xlu0 %331
        %v333 = vrcp.pop 32.0
        %v334 = vmul.f32 %v332, %v333
        %v335 = vmul.f32 %v327, %v327
        %v336 = vsel %vm329, %v335, 0.0
        %337 = vadd.xlane.f32.xlu0 %v336
        %v338 = vpop.xlane.xlu0 %337
        %v339 = vmul.f32 %v338, %v333
        %v340 = vmul.f32 %v334, %v334
        %v341 = vsub.f32 %v339, %v340
        %v342 = vsub.f32 %v327, %v334
        %v343 = vadd.f32 %v341, 1e-06
        %v344 = vrsqrt.pop %v343
        %v345 = vmul.f32 %v342, %v344
        %v346 = vadd.f32 %v328, 1.0
        %v347 = vlaneseq
        %v348 = vshrl.u32 %v347, 7
        %v349 = vsub.s32 1, %v348
        %v350 = vrot.slane %v346, %v349
        %v351 = vmul.f32 %v345, %v350
        %v352 = vlaneseq
        %v353 = vshrl.u32 %v352, 7
        %v354 = vsub.s32 0, %v353
        %v355 = vrot.slane %v328, %v354
        %v356 = vadd.f32 %v351, %v355
        %v357 = vpack.c.bf16 %v356, %v356
        %v358 = vld [vmem:[#allocation2] sm:$0xff]
        %v359 = vld [vmem:[#allocation2 + $0x8] sm:$0xff]
        %v360 = vld [vmem:[#allocation2 + $0x10] sm:$0xff]
        %v361 = vld [vmem:[#allocation2 + $0x18] sm:$0xff]
        %v362 = vld [vmem:[#allocation2 + $0x20] sm:$0xff]
        %v363 = vld [vmem:[#allocation2 + $0x28] sm:$0xff]
        %v364 = vld [vmem:[#allocation2 + $0x30] sm:$0xff]
        %v365 = vld [vmem:[#allocation2 + $0x38] sm:$0xff]
        %v366 = vld [vmem:[#allocation2 + $0x40] sm:$0xff]
        %v367 = vld [vmem:[#allocation2 + $0x48] sm:$0xff]
        %v368 = vld [vmem:[#allocation2 + $0x50] sm:$0xff]
        %v369 = vld [vmem:[#allocation2 + $0x58] sm:$0xff]
        %v370 = vld [vmem:[#allocation2 + $0x60] sm:$0xff]
        %v371 = vld [vmem:[#allocation2 + $0x68] sm:$0xff]
        %v372 = vld [vmem:[#allocation2 + $0x70] sm:$0xff]
        %v373 = vld [vmem:[#allocation2 + $0x78] sm:$0xff]
        %v374 = vld [vmem:[#allocation2 + $0x80] sm:$0xff]
        %v375 = vld [vmem:[#allocation2 + $0x88] sm:$0xff]
        %v376 = vld [vmem:[#allocation2 + $0x90] sm:$0xff]
        %v377 = vld [vmem:[#allocation2 + $0x98] sm:$0xff]
        %v378 = vld [vmem:[#allocation2 + $0xa0] sm:$0xff]
        %v379 = vld [vmem:[#allocation2 + $0xa8] sm:$0xff]
        %v380 = vld [vmem:[#allocation2 + $0xb0] sm:$0xff]
        %v381 = vld [vmem:[#allocation2 + $0xb8] sm:$0xff]
        %v382 = vld [vmem:[%s3] sm:$0xff]
        %v383 = vld [vmem:[%s3 + $0x8] sm:$0xf]
        %v386 = vlaneseq
        %v387 = vshrl.u32 %v386, 7
        %v388 = vsub.s32 0, %v387
        %v389 = vrot.slane %v382, %v388
        %v390 = vlaneseq
        %v391 = vshrl.u32 %v390, 7
        %v392 = vsub.s32 1, %v391
        %v393 = vrot.slane %v382, %v392
        %v394 = vlaneseq
        %v395 = vshrl.u32 %v394, 7
        %v396 = vsub.s32 2, %v395
        %v397 = vrot.slane %v382, %v396
        %v398 = vlaneseq
        %v399 = vshrl.u32 %v398, 7
        %v400 = vsub.s32 3, %v399
        %v401 = vrot.slane %v382, %v400
        %v402 = vlaneseq
        %v403 = vshrl.u32 %v402, 7
        %v404 = vsub.s32 4, %v403
        %v405 = vrot.slane %v382, %v404
        %v406 = vlaneseq
        %v407 = vshrl.u32 %v406, 7
        %v408 = vsub.s32 5, %v407
        %v409 = vrot.slane %v382, %v408
        %v410 = vlaneseq
        %v411 = vshrl.u32 %v410, 7
        %v412 = vsub.s32 6, %v411
        %v413 = vrot.slane %v382, %v412
        %v414 = vlaneseq
        %v415 = vshrl.u32 %v414, 7
        %v416 = vsub.s32 7, %v415
        %v417 = vrot.slane %v382, %v416
        %v418 = vlaneseq
        %v419 = vshrl.u32 %v418, 7
        %v420 = vsub.s32 0, %v419
        %v421 = vrot.slane %v383, %v420
        %v422 = vlaneseq
        %v423 = vshrl.u32 %v422, 7
        %v424 = vsub.s32 1, %v423
        %v425 = vrot.slane %v383, %v424
        %v426 = vlaneseq
        %v427 = vshrl.u32 %v426, 7
        %v428 = vsub.s32 2, %v427
        %v429 = vrot.slane %v383, %v428
        %v430 = vlaneseq
        %v431 = vshrl.u32 %v430, 7
        %v432 = vsub.s32 3, %v431
        %v433 = vrot.slane %v383, %v432
        %v470 = vunpack.c.l.b16 %v358
        %v471 = vunpack.c.h.b16 %v358
        %v472 = vunpack.c.l.b16 %v359
        %v473 = vunpack.c.h.b16 %v359
        %v474 = vunpack.c.l.b16 %v360
        %v475 = vunpack.c.h.b16 %v360
        %v476 = vunpack.c.l.b16 %v361
        %v477 = vunpack.c.h.b16 %v361
        %v478 = vunpack.c.l.b16 %v362
        %v479 = vunpack.c.h.b16 %v362
        %v480 = vunpack.c.l.b16 %v363
        %v481 = vunpack.c.h.b16 %v363
        %v482 = vunpack.c.l.b16 %v364
        %v483 = vunpack.c.h.b16 %v364
        %v484 = vunpack.c.l.b16 %v365
        %v485 = vunpack.c.h.b16 %v365
        %v486 = vunpack.c.l.b16 %v366
        %v487 = vunpack.c.h.b16 %v366
        %v488 = vunpack.c.l.b16 %v367
        %v489 = vunpack.c.h.b16 %v367
        %v490 = vunpack.c.l.b16 %v368
        %v491 = vunpack.c.h.b16 %v368
        %v492 = vunpack.c.l.b16 %v369
        %v493 = vunpack.c.h.b16 %v369
        %v494 = vunpack.c.l.b16 %v370
        %v495 = vunpack.c.h.b16 %v370
        %v496 = vunpack.c.l.b16 %v371
        %v497 = vunpack.c.h.b16 %v371
        %v498 = vunpack.c.l.b16 %v372
        %v499 = vunpack.c.h.b16 %v372
        %v500 = vunpack.c.l.b16 %v373
        %v501 = vunpack.c.h.b16 %v373
        %v502 = vunpack.c.l.b16 %v374
        %v503 = vunpack.c.h.b16 %v374
        %v504 = vunpack.c.l.b16 %v375
        %v505 = vunpack.c.h.b16 %v375
        %v506 = vunpack.c.l.b16 %v376
        %v507 = vunpack.c.h.b16 %v376
        %v508 = vunpack.c.l.b16 %v377
        %v509 = vunpack.c.h.b16 %v377
        %v510 = vunpack.c.l.b16 %v378
        %v511 = vunpack.c.h.b16 %v378
        %v512 = vunpack.c.l.b16 %v379
        %v513 = vunpack.c.h.b16 %v379
        %v514 = vunpack.c.l.b16 %v380
        %v515 = vunpack.c.h.b16 %v380
        %v516 = vunpack.c.l.b16 %v381
        %v517 = vunpack.c.h.b16 %v381
        %v518 = vpack.c.b16 %v482, %v470
        %v519 = vpack.c.b16 %v483, %v471
        %v520 = vpack.c.b16 %v484, %v472
        %v521 = vpack.c.b16 %v485, %v473
        %v522 = vpack.c.b16 %v486, %v474
        %v523 = vpack.c.b16 %v487, %v475
        %v524 = vpack.c.b16 %v488, %v476
        %v525 = vpack.c.b16 %v489, %v477
        %v526 = vpack.c.b16 %v490, %v478
        %v527 = vpack.c.b16 %v491, %v479
        %v528 = vpack.c.b16 %v492, %v480
        %v529 = vpack.c.b16 %v493, %v481
        %v530 = vpack.c.b16 %v506, %v494
        %v531 = vpack.c.b16 %v507, %v495
        %v532 = vpack.c.b16 %v508, %v496
        %v533 = vpack.c.b16 %v509, %v497
        %v534 = vpack.c.b16 %v510, %v498
        %v535 = vpack.c.b16 %v511, %v499
        %v536 = vpack.c.b16 %v512, %v500
        %v537 = vpack.c.b16 %v513, %v501
        %v538 = vpack.c.b16 %v514, %v502
        %v539 = vpack.c.b16 %v515, %v503
        %v540 = vpack.c.b16 %v516, %v504
        %v541 = vpack.c.b16 %v517, %v505
        %v567 = vsel %vm329, %v357, 0
        %569 = vmatprep.subr.bf16.mxu0 0
        %570 = vmatpush1.bf16.msra.mxu0 0
        %571 = vmatprep.subr.bf16.mxu0 0
        %572 = vmatpush1.bf16.msra.mxu0 0
        %573 = vmatprep.subr.bf16.mxu0 0
        %574 = vmatpush1.bf16.msra.mxu0 0
        %575 = vmatprep.subr.bf16.mxu0 0
        %576 = vmatpush1.bf16.msra.mxu0 0
        %577 = vmatprep.subr.bf16.mxu0 0
        %578 = vmatpush1.bf16.msra.mxu0 0
        %579 = vmatprep.subr.bf16.mxu0 0
        %580 = vmatpush1.bf16.msra.mxu0 0
        %581 = vmatprep.subr.bf16.mxu0 %v531
        %582 = vmatpush1.bf16.msra.mxu0 %v530
        %583 = vmatprep.subr.bf16.mxu0 %v519
        %584 = vmatpush1.bf16.msra.mxu0 %v518
        %585 = vmatprep.subr.bf16.mxu0 0
        %586 = vmatpush2.bf16.msra.mxu0 0
        %587 = vmatprep.subr.bf16.mxu0 0
        %588 = vmatpush2.bf16.msra.mxu0 0
        %589 = vmatprep.subr.bf16.mxu0 0
        %590 = vmatpush2.bf16.msra.mxu0 0
        %591 = vmatprep.subr.bf16.mxu0 0
        %592 = vmatpush2.bf16.msra.mxu0 0
        %593 = vmatprep.subr.bf16.mxu0 0
        %594 = vmatpush2.bf16.msra.mxu0 0
        %595 = vmatprep.subr.bf16.mxu0 0
        %596 = vmatpush2.bf16.msra.mxu0 0
        %597 = vmatprep.subr.bf16.mxu0 0
        %598 = vmatpush2.bf16.msra.mxu0 0
        %599 = vmatprep.subr.bf16.mxu0 0
        %600 = vmatpush2.bf16.msra.mxu0 0
        %601 = vmatprep.mubr.bf16.mxu0 0
        %602 = vmatmul.mubr.bf16.gmra.mxu0 %v567
        %v603 = vpop.f32.mrf.mxu0
        %v604 = vadd.f32 %v389, %v603
        %v605 = vpop.f32.mrf.mxu0
        %v606 = vadd.f32 %v393, %v605
        %v607 = vpop.f32.mrf.mxu0
        %v608 = vpop.f32.mrf.mxu0
        %609 = vdwg.mxu0
        %610 = vmatprep.subr.bf16.mxu0 0
        %611 = vmatpush1.bf16.msra.mxu0 0
        %612 = vmatprep.subr.bf16.mxu0 0
        %613 = vmatpush1.bf16.msra.mxu0 0
        %614 = vmatprep.subr.bf16.mxu0 0
        %615 = vmatpush1.bf16.msra.mxu0 0
        %616 = vmatprep.subr.bf16.mxu0 0
        %617 = vmatpush1.bf16.msra.mxu0 0
        %618 = vmatprep.subr.bf16.mxu0 0
        %619 = vmatpush1.bf16.msra.mxu0 0
        %620 = vmatprep.subr.bf16.mxu0 0
        %621 = vmatpush1.bf16.msra.mxu0 0
        %622 = vmatprep.subr.bf16.mxu0 %v533
        %623 = vmatpush1.bf16.msra.mxu0 %v532
        %624 = vmatprep.subr.bf16.mxu0 %v521
        %625 = vmatpush1.bf16.msra.mxu0 %v520
        %626 = vmatprep.subr.bf16.mxu0 0
        %627 = vmatpush2.bf16.msra.mxu0 0
        %628 = vmatprep.subr.bf16.mxu0 0
        %629 = vmatpush2.bf16.msra.mxu0 0
        %630 = vmatprep.subr.bf16.mxu0 0
        %631 = vmatpush2.bf16.msra.mxu0 0
        %632 = vmatprep.subr.bf16.mxu0 0
        %633 = vmatpush2.bf16.msra.mxu0 0
        %634 = vmatprep.subr.bf16.mxu0 0
        %635 = vmatpush2.bf16.msra.mxu0 0
        %636 = vmatprep.subr.bf16.mxu0 0
        %637 = vmatpush2.bf16.msra.mxu0 0
        %638 = vmatprep.subr.bf16.mxu0 0
        %639 = vmatpush2.bf16.msra.mxu0 0
        %640 = vmatprep.subr.bf16.mxu0 0
        %641 = vmatpush2.bf16.msra.mxu0 0
        %642 = vmatprep.mubr.bf16.mxu0 0
        %643 = vmatmul.mubr.bf16.gmra.mxu0 %v567
        %v644 = vpop.f32.mrf.mxu0
        %v645 = vadd.f32 %v397, %v644
        %v646 = vpop.f32.mrf.mxu0
        %v647 = vadd.f32 %v401, %v646
        %v648 = vpop.f32.mrf.mxu0
        %v649 = vpop.f32.mrf.mxu0
        %650 = vdwg.mxu0
        %651 = vmatprep.subr.bf16.mxu0 0
        %652 = vmatpush1.bf16.msra.mxu0 0
        %653 = vmatprep.subr.bf16.mxu0 0
        %654 = vmatpush1.bf16.msra.mxu0 0
        %655 = vmatprep.subr.bf16.mxu0 0
        %656 = vmatpush1.bf16.msra.mxu0 0
        %657 = vmatprep.subr.bf16.mxu0 0
        %658 = vmatpush1.bf16.msra.mxu0 0
        %659 = vmatprep.subr.bf16.mxu0 0
        %660 = vmatpush1.bf16.msra.mxu0 0
        %661 = vmatprep.subr.bf16.mxu0 0
        %662 = vmatpush1.bf16.msra.mxu0 0
        %663 = vmatprep.subr.bf16.mxu0 %v535
        %664 = vmatpush1.bf16.msra.mxu0 %v534
        %665 = vmatprep.subr.bf16.mxu0 %v523
        %666 = vmatpush1.bf16.msra.mxu0 %v522
        %667 = vmatprep.subr.bf16.mxu0 0
        %668 = vmatpush2.bf16.msra.mxu0 0
        %669 = vmatprep.subr.bf16.mxu0 0
        %670 = vmatpush2.bf16.msra.mxu0 0
        %671 = vmatprep.subr.bf16.mxu0 0
        %672 = vmatpush2.bf16.msra.mxu0 0
        %673 = vmatprep.subr.bf16.mxu0 0
        %674 = vmatpush2.bf16.msra.mxu0 0
        %675 = vmatprep.subr.bf16.mxu0 0
        %676 = vmatpush2.bf16.msra.mxu0 0
        %677 = vmatprep.subr.bf16.mxu0 0
        %678 = vmatpush2.bf16.msra.mxu0 0
        %679 = vmatprep.subr.bf16.mxu0 0
        %680 = vmatpush2.bf16.msra.mxu0 0
        %681 = vmatprep.subr.bf16.mxu0 0
        %682 = vmatpush2.bf16.msra.mxu0 0
        %683 = vmatprep.mubr.bf16.mxu0 0
        %684 = vmatmul.mubr.bf16.gmra.mxu0 %v567
        %v685 = vpop.f32.mrf.mxu0
        %v686 = vadd.f32 %v405, %v685
        %v687 = vpop.f32.mrf.mxu0
        %v688 = vadd.f32 %v409, %v687
        %v689 = vpop.f32.mrf.mxu0
        %v690 = vpop.f32.mrf.mxu0
        %691 = vdwg.mxu0
        %692 = vmatprep.subr.bf16.mxu0 0
        %693 = vmatpush1.bf16.msra.mxu0 0
        %694 = vmatprep.subr.bf16.mxu0 0
        %695 = vmatpush1.bf16.msra.mxu0 0
        %696 = vmatprep.subr.bf16.mxu0 0
        %697 = vmatpush1.bf16.msra.mxu0 0
        %698 = vmatprep.subr.bf16.mxu0 0
        %699 = vmatpush1.bf16.msra.mxu0 0
        %700 = vmatprep.subr.bf16.mxu0 0
        %701 = vmatpush1.bf16.msra.mxu0 0
        %702 = vmatprep.subr.bf16.mxu0 0
        %703 = vmatpush1.bf16.msra.mxu0 0
        %704 = vmatprep.subr.bf16.mxu0 %v537
        %705 = vmatpush1.bf16.msra.mxu0 %v536
        %706 = vmatprep.subr.bf16.mxu0 %v525
        %707 = vmatpush1.bf16.msra.mxu0 %v524
        %708 = vmatprep.subr.bf16.mxu0 0
        %709 = vmatpush2.bf16.msra.mxu0 0
        %710 = vmatprep.subr.bf16.mxu0 0
        %711 = vmatpush2.bf16.msra.mxu0 0
        %712 = vmatprep.subr.bf16.mxu0 0
        %713 = vmatpush2.bf16.msra.mxu0 0
        %714 = vmatprep.subr.bf16.mxu0 0
        %715 = vmatpush2.bf16.msra.mxu0 0
        %716 = vmatprep.subr.bf16.mxu0 0
        %717 = vmatpush2.bf16.msra.mxu0 0
        %718 = vmatprep.subr.bf16.mxu0 0
        %719 = vmatpush2.bf16.msra.mxu0 0
        %720 = vmatprep.subr.bf16.mxu0 0
        %721 = vmatpush2.bf16.msra.mxu0 0
        %722 = vmatprep.subr.bf16.mxu0 0
        %723 = vmatpush2.bf16.msra.mxu0 0
        %724 = vmatprep.mubr.bf16.mxu0 0
        %725 = vmatmul.mubr.bf16.gmra.mxu0 %v567
        %v726 = vpop.f32.mrf.mxu0
        %v727 = vadd.f32 %v413, %v726
        %v728 = vpop.f32.mrf.mxu0
        %v729 = vadd.f32 %v417, %v728
        %v730 = vpop.f32.mrf.mxu0
        %v731 = vpop.f32.mrf.mxu0
        %732 = vdwg.mxu0
        %733 = vmatprep.subr.bf16.mxu0 0
        %734 = vmatpush1.bf16.msra.mxu0 0
        %735 = vmatprep.subr.bf16.mxu0 0
        %736 = vmatpush1.bf16.msra.mxu0 0
        %737 = vmatprep.subr.bf16.mxu0 0
        %738 = vmatpush1.bf16.msra.mxu0 0
        %739 = vmatprep.subr.bf16.mxu0 0
        %740 = vmatpush1.bf16.msra.mxu0 0
        %741 = vmatprep.subr.bf16.mxu0 0
        %742 = vmatpush1.bf16.msra.mxu0 0
        %743 = vmatprep.subr.bf16.mxu0 0
        %744 = vmatpush1.bf16.msra.mxu0 0
        %745 = vmatprep.subr.bf16.mxu0 %v539
        %746 = vmatpush1.bf16.msra.mxu0 %v538
        %747 = vmatprep.subr.bf16.mxu0 %v527
        %748 = vmatpush1.bf16.msra.mxu0 %v526
        %749 = vmatprep.subr.bf16.mxu0 0
        %750 = vmatpush2.bf16.msra.mxu0 0
        %751 = vmatprep.subr.bf16.mxu0 0
        %752 = vmatpush2.bf16.msra.mxu0 0
        %753 = vmatprep.subr.bf16.mxu0 0
        %754 = vmatpush2.bf16.msra.mxu0 0
        %755 = vmatprep.subr.bf16.mxu0 0
        %756 = vmatpush2.bf16.msra.mxu0 0
        %757 = vmatprep.subr.bf16.mxu0 0
        %758 = vmatpush2.bf16.msra.mxu0 0
        %759 = vmatprep.subr.bf16.mxu0 0
        %760 = vmatpush2.bf16.msra.mxu0 0
        %761 = vmatprep.subr.bf16.mxu0 0
        %762 = vmatpush2.bf16.msra.mxu0 0
        %763 = vmatprep.subr.bf16.mxu0 0
        %764 = vmatpush2.bf16.msra.mxu0 0
        %765 = vmatprep.mubr.bf16.mxu0 0
        %766 = vmatmul.mubr.bf16.gmra.mxu0 %v567
        %v767 = vpop.f32.mrf.mxu0
        %v768 = vadd.f32 %v421, %v767
        %v769 = vpop.f32.mrf.mxu0
        %v770 = vadd.f32 %v425, %v769
        %v771 = vpop.f32.mrf.mxu0
        %v772 = vpop.f32.mrf.mxu0
        %773 = vdwg.mxu0
        %774 = vmatprep.subr.bf16.mxu0 0
        %775 = vmatpush1.bf16.msra.mxu0 0
        %776 = vmatprep.subr.bf16.mxu0 0
        %777 = vmatpush1.bf16.msra.mxu0 0
        %778 = vmatprep.subr.bf16.mxu0 0
        %779 = vmatpush1.bf16.msra.mxu0 0
        %780 = vmatprep.subr.bf16.mxu0 0
        %781 = vmatpush1.bf16.msra.mxu0 0
        %782 = vmatprep.subr.bf16.mxu0 0
        %783 = vmatpush1.bf16.msra.mxu0 0
        %784 = vmatprep.subr.bf16.mxu0 0
        %785 = vmatpush1.bf16.msra.mxu0 0
        %786 = vmatprep.subr.bf16.mxu0 %v541
        %787 = vmatpush1.bf16.msra.mxu0 %v540
        %788 = vmatprep.subr.bf16.mxu0 %v529
        %789 = vmatpush1.bf16.msra.mxu0 %v528
        %790 = vmatprep.subr.bf16.mxu0 0
        %791 = vmatpush2.bf16.msra.mxu0 0
        %792 = vmatprep.subr.bf16.mxu0 0
        %793 = vmatpush2.bf16.msra.mxu0 0
        %794 = vmatprep.subr.bf16.mxu0 0
        %795 = vmatpush2.bf16.msra.mxu0 0
        %796 = vmatprep.subr.bf16.mxu0 0
        %797 = vmatpush2.bf16.msra.mxu0 0
        %798 = vmatprep.subr.bf16.mxu0 0
        %799 = vmatpush2.bf16.msra.mxu0 0
        %800 = vmatprep.subr.bf16.mxu0 0
        %801 = vmatpush2.bf16.msra.mxu0 0
        %802 = vmatprep.subr.bf16.mxu0 0
        %803 = vmatpush2.bf16.msra.mxu0 0
        %804 = vmatprep.subr.bf16.mxu0 0
        %805 = vmatpush2.bf16.msra.mxu0 0
        %806 = vmatprep.mubr.bf16.mxu0 0
        %807 = vmatmul.mubr.bf16.gmra.mxu0 %v567
        %v808 = vpop.f32.mrf.mxu0
        %v809 = vadd.f32 %v429, %v808
        %v810 = vpop.f32.mrf.mxu0
        %v811 = vadd.f32 %v433, %v810
        %v812 = vpop.f32.mrf.mxu0
        %v813 = vpop.f32.mrf.mxu0
        %814 = vdwg.mxu0
        %v815 = vpack.c.bf16 %v604, %v604
        %v816 = vpack.c.bf16 %v606, %v606
        %v817 = vpack.c.bf16 %v645, %v645
        %v818 = vpack.c.bf16 %v647, %v647
        %v819 = vpack.c.bf16 %v686, %v686
        %v820 = vpack.c.bf16 %v688, %v688
        %v821 = vpack.c.bf16 %v727, %v727
        %v822 = vpack.c.bf16 %v729, %v729
        %v823 = vpack.c.bf16 %v768, %v768
        %v824 = vpack.c.bf16 %v770, %v770
        %v825 = vpack.c.bf16 %v809, %v809
        %v826 = vpack.c.bf16 %v811, %v811
        %827 = vst [vmem:[%s300] sm:$0xf] %v815
        %828 = vst [vmem:[%s307] sm:$0xf] %v819
        %829 = vst [vmem:[%s314] sm:$0xf] %v823
        %s830 = scalar_lea.vmem %s300, 4 [#allocation5]
        %831 = vst [vmem:[%s830] sm:$0xf] %v816
        %s832 = scalar_lea.vmem %s307, 4 [#allocation6]
        %833 = vst [vmem:[%s832] sm:$0xf] %v820
        %s834 = scalar_lea.vmem %s314, 4 [#allocation8]
        %835 = vst [vmem:[%s834] sm:$0xf] %v824
        %s836 = scalar_lea.vmem %s300, 8 [#allocation5]
        %837 = vst [vmem:[%s836] sm:$0xf] %v817
        %s838 = scalar_lea.vmem %s307, 8 [#allocation6]
        %839 = vst [vmem:[%s838] sm:$0xf] %v821
        %s840 = scalar_lea.vmem %s314, 8 [#allocation8]
        %841 = vst [vmem:[%s840] sm:$0xf] %v825
        %s842 = scalar_lea.vmem %s300, 12 [#allocation5]
        %843 = vst [vmem:[%s842] sm:$0xf] %v818
        %s844 = scalar_lea.vmem %s307, 12 [#allocation6]
        %845 = vst [vmem:[%s844] sm:$0xf] %v822
        %s846 = scalar_lea.vmem %s314, 12 [#allocation8]
        %847 = vst [vmem:[%s846] sm:$0xf] %v826
        %s848 = sand.u32 %s143, 1
        %s849 = scalar_lea.sflag [#allocation4], %s848
        %s850 = sand.u32 %s143, 1
        %s851 = smul.addr %s850, 16
        %s852 = scalar_lea.vmem [#allocation5], %s851
        %s853 = sand.u32 %s25, 1
        %s854 = scalar_lea.sflag [#allocation7], %s853
        %s855 = sand.u32 %s171, 1
        %s856 = smul.addr %s855, 16
        %s857 = scalar_lea.vmem [#allocation6], %s856
        %s858 = sand.u32 %s25, 1
        %s859 = scalar_lea.sflag [#allocation7], %s858
        %s860 = sand.u32 %s199, 1
        %s861 = smul.addr %s860, 16
        %s862 = scalar_lea.vmem [#allocation8], %s861
        // Predicated region
        $region41: #{tpu_custom_call.1} parent=35 // pred_check
          %p863 = pneg %p153
        $region42: #{tpu_custom_call.1} parent=35 // pred_check_branch
          %865 = sbr.rel (%p863) target = $region44
        $region43: #{tpu_custom_call.1} parent=35 // pred_region
          %s867 = ssub.s32 256, 256
          %868 = vsyncadd %s849, %s867
          %s869 = smul.addr %s29, 4
          %s870 = sadd.s32 %s30, %s869
          %s871 = smul.addr %s870, 64
          %s872 = scalar_lea.hbm %s4, %s871
          %s873 = sshll.u32 %s852, 4
          %s874 = int_to_ptr.vmem [resolvable:$true] %s873
          %879 = dma.vmem_to_hbm [thread:$0]  %s874, 256, %s872, %s849, 64, 64, 4
        $region44: #{tpu_custom_call.1} parent=35 // pred_fallthru
          _
        // Predicated region
        $region45: #{tpu_custom_call.1} parent=35 // pred_check
          %p880 = pneg %p181
        $region46: #{tpu_custom_call.1} parent=35 // pred_check_branch
          %882 = sbr.rel (%p880) target = $region48
        $region47: #{tpu_custom_call.1} parent=35 // pred_region
          %s884 = ssub.s32 256, 256
          %885 = vsyncadd %s854, %s884
          %s886 = smul.addr %s29, 4
          %s887 = sadd.s32 %s30, %s886
          %s888 = smul.addr %s887, 64
          %s889 = scalar_lea.hbm %s5, %s888
          %s890 = sshll.u32 %s857, 4
          %s891 = int_to_ptr.vmem [resolvable:$true] %s890
          %896 = dma.vmem_to_hbm [thread:$0]  %s891, 256, %s889, %s854, 64, 64, 4
        $region48: #{tpu_custom_call.1} parent=35 // pred_fallthru
          _
        // Predicated region
        $region49: #{tpu_custom_call.1} parent=35 // pred_check
          %p897 = pneg %p209
        $region50: #{tpu_custom_call.1} parent=35 // pred_check_branch
          %899 = sbr.rel (%p897) target = $region52
        $region51: #{tpu_custom_call.1} parent=35 // pred_region
          %s901 = ssub.s32 256, 256
          %902 = vsyncadd %s859, %s901
          %s903 = smul.addr %s29, 4
          %s904 = sadd.s32 %s30, %s903
          %s905 = smul.addr %s904, 64
          %s906 = scalar_lea.hbm %s6, %s905
          %s907 = sshll.u32 %s862, 4
          %s908 = int_to_ptr.vmem [resolvable:$true] %s907
          %913 = dma.vmem_to_hbm [thread:$0]  %s908, 256, %s906, %s859, 64, 64, 4
        $region52: #{tpu_custom_call.1} parent=35 // pred_fallthru
          _
      $region36: #{tpu_custom_call.1} parent=5 // pred_fallthru
        _
      %p914 = scmp.le.s32.totalorder 2, %s20
      // Predicated region
      $region53: #{tpu_custom_call.1} parent=5 // pred_check
        %p915 = pneg %p914
      $region54: #{tpu_custom_call.1} parent=5 // pred_check_branch
        %917 = sbr.rel (%p915) target = $region56
      $region55: #{tpu_custom_call.1} parent=5 // pred_region
        %s918 = ssub.s32 %s20, 2
        // Predicated region
        $region57: #{tpu_custom_call.1} parent=55 // pred_check
          %p919 = pneg %p159
        $region58: #{tpu_custom_call.1} parent=55 // pred_check_branch
          %921 = sbr.rel (%p919) target = $region60
        $region59: #{tpu_custom_call.1} parent=55 // pred_region
          %s922 = sand.u32 %s144, 1
          %s923 = scalar_lea.sflag [#allocation4], %s922
          %s924 = sand.u32 %s144, 1
          %s925 = smul.addr %s924, 16
          %s926 = scalar_lea.vmem [#allocation5], %s925
          %927 = dma.done %s923, 256
        $region60: #{tpu_custom_call.1} parent=55 // pred_fallthru
          _
        // Predicated region
        $region61: #{tpu_custom_call.1} parent=55 // pred_check
          %p928 = pneg %p187
        $region62: #{tpu_custom_call.1} parent=55 // pred_check_branch
          %930 = sbr.rel (%p928) target = $region64
        $region63: #{tpu_custom_call.1} parent=55 // pred_region
          %s931 = sand.u32 %s26, 1
          %s932 = scalar_lea.sflag [#allocation7], %s931
          %s933 = sand.u32 %s172, 1
          %s934 = smul.addr %s933, 16
          %s935 = scalar_lea.vmem [#allocation6], %s934
          %936 = dma.done %s932, 256
        $region64: #{tpu_custom_call.1} parent=55 // pred_fallthru
          _
        // Predicated region
        $region65: #{tpu_custom_call.1} parent=55 // pred_check
          %p937 = pneg %p215
        $region66: #{tpu_custom_call.1} parent=55 // pred_check_branch
          %939 = sbr.rel (%p937) target = $region68
        $region67: #{tpu_custom_call.1} parent=55 // pred_region
          %s940 = sand.u32 %s26, 1
          %s941 = scalar_lea.sflag [#allocation7], %s940
          %s942 = sand.u32 %s200, 1
          %s943 = smul.addr %s942, 16
          %s944 = scalar_lea.vmem [#allocation8], %s943
          %945 = dma.done %s941, 256
        $region68: #{tpu_custom_call.1} parent=55 // pred_fallthru
          _
      $region56: #{tpu_custom_call.1} parent=5 // pred_fallthru
        _
    $region6: #{tpu_custom_call.1} parent=1 // loop_footer
      %s24 = sadd.s32 1, %s20
    $region7: #{tpu_custom_call.1} parent=1 // loop_footer_branch
      %19 = sbr.rel target = $region3
    $region8: #{tpu_custom_call.1} parent=1 // loop_exit
      _
    %946 = vsyncpa [#allocation3], 1
    %s947 = scalar_lea.sflag [#allocation3], 1
    %948 = vsyncpa %s947, 1
    %949 = vsyncpa [#allocation4], 1
    %s950 = scalar_lea.sflag [#allocation4], 1
    %951 = vsyncpa %s950, 1
    %952 = vsyncpa [#allocation7], 1
    %s953 = scalar_lea.sflag [#allocation7], 1
    %954 = vsyncpa %s953, 1

</llo_original>
